<compile_context>
chip_gen: v5e
topology: v5e:2x2
jax: 0.10.0
libtpu: 0.0.40
codegen_flags: <defaults>
</compile_context>

<pallas_src>
import functools
from typing import NamedTuple

import jax
import jax.numpy as jnp
import numpy as np
from jax.experimental import pallas as pl
from jax.experimental.pallas import tpu as pltpu

LANE = 128
ACT_DTYPE = jnp.bfloat16          # activation storage / MXU input dtype (f32 accumulate)
_ACT_ISIZE = jnp.dtype(ACT_DTYPE).itemsize


# ------------------------------ helpers ---------------------------------------

def _round_up(x, m):
    return ((x + m - 1) // m) * m


def _pad_to_lane(c):
    return _round_up(max(int(c), 1), LANE)


def _vmem_limit_bytes():
    """Per-generation scoped-VMEM budget: ~48 MiB on v7x (64 MiB phys), 96 MiB on v5e/v6e."""
    try:
        phys = int(pltpu.get_tpu_info().vmem_capacity_bytes)
        return min((phys * 3) // 4, 96 * 1024 * 1024)
    except Exception:
        return 32 * 1024 * 1024


def _bf16_vpu():
    """bf16 VALU exists on v6e/v7x; v2-v5 need the f32 upcast."""
    try:
        kind = jax.devices()[0].device_kind.lower()
    except Exception:
        return False
    return not any(v in kind for v in ("v2", "v3", "v4", "v5"))


_VMEM_LIMIT = _vmem_limit_bytes()
_BF16_VPU = _bf16_vpu()


def _pick_m_tiles(m):
    """Pad M to an aligned size and pick a row tile; keep >=2 M iterations for megacore
    (v7x) whenever that does not shrink the tile below 256 rows."""
    mp = _round_up(m, 8)
    if mp >= 1024:
        tm = 1024
    elif mp >= 512:
        tm = 512
    elif mp >= 256:
        tm = 256
    else:
        tm = mp
    mp = _round_up(mp, tm)
    if mp // tm < 2 and tm >= 512:
        tm //= 2
    return mp, tm


def _pick_n_tile(n):
    """n is always a multiple of 128 (lane padding)."""
    if n <= 256:
        return n
    return 256 if n % 256 == 0 else 128


def _pick_k_tile(k):
    """k is always a multiple of 128 (lane padding)."""
    if k <= 1024:
        return k
    for cand in (1024, 512, 256, 128):
        if k % cand == 0:
            return cand
    return k


class Activation(NamedTuple):
    """Internal DAG value: NHWC flattened to a lane-dense (N*H*W, Cpad) slab (bf16)."""
    slab: jax.Array
    n: int
    h: int
    w: int
    c: int            # real (unpadded) channel count


def _to_internal(x_nchw):
    n, c, h, w = x_nchw.shape
    cp = _pad_to_lane(c)
    x = jnp.transpose(x_nchw, (0, 2, 3, 1))               # NHWC
    if cp != c:
        x = jnp.pad(x, ((0, 0), (0, 0), (0, 0), (0, cp - c)))
    return Activation(x.reshape(n * h * w, cp).astype(ACT_DTYPE), n, h, w, c)


def _to_external(act):
    cp = act.slab.shape[1]
    x = act.slab.reshape(act.n, act.h, act.w, cp)[..., :act.c]
    return jnp.transpose(x, (0, 3, 1, 2)).astype(jnp.float32)   # back to NCHW f32


# ------------------------------ Pallas kernels ---------------------------------

def _matmul_bias_relu_kernel(*refs, has_residual):
    """Tiled o = relu(x @ w + b) [+ res]; f32 accumulation in a VMEM scratch."""
    if has_residual:
        x_ref, w_ref, b_ref, res_ref, o_ref, acc_ref = refs
    else:
        x_ref, w_ref, b_ref, o_ref, acc_ref = refs
        res_ref = None
    k = pl.program_id(2)

    @pl.when(k == 0)
    def _():
        acc_ref[...] = jnp.zeros_like(acc_ref)

    acc_ref[...] += jnp.dot(x_ref[...], w_ref[...],
                            preferred_element_type=jnp.float32)

    @pl.when(k == pl.num_programs(2) - 1)
    def _():
        out = jnp.maximum(acc_ref[...] + b_ref[...].astype(jnp.float32), 0.0)
        if res_ref is not None:
            out = out + res_ref[...].astype(jnp.float32)
        o_ref[...] = out.astype(o_ref.dtype)


def _matmul_bias_relu(x, w, b, res=None):
    """x: (M, K) bf16, w: (K, N) bf16, b: (1, N) f32, res: (M, N) bf16 or None.
    K and N are multiples of 128; M may be ragged (padded here)."""
    m, kdim = x.shape
    _, nout = w.shape
    mp, tm = _pick_m_tiles(m)
    tn = _pick_n_tile(nout)
    tk = _pick_k_tile(kdim)
    if mp != m:
        x = jnp.pad(x, ((0, mp - m), (0, 0)))
        if res is not None:
            res = jnp.pad(res, ((0, mp - m), (0, 0)))
    grid = (mp // tm, nout // tn, kdim // tk)

    in_specs = [
        pl.BlockSpec((tm, tk), lambda i, j, k: (i, k)),
        pl.BlockSpec((tk, tn), lambda i, j, k: (k, j)),
        pl.BlockSpec((1, tn), lambda i, j, k: (0, j)),
    ]
    args = [x, w, b]
    if res is not None:
        in_specs.append(pl.BlockSpec((tm, tn), lambda i, j, k: (i, j)))
        args.append(res)

    # HBM traffic including re-reads: x is re-read once per N tile, w/b once per M tile.
    bytes_accessed = (x.size * x.dtype.itemsize * grid[1]
                      + w.size * w.dtype.itemsize * grid[0]
                      + b.size * b.dtype.itemsize * grid[0]
                      + mp * nout * _ACT_ISIZE)
    if res is not None:
        bytes_accessed += res.size * res.dtype.itemsize

    out = pl.pallas_call(
        functools.partial(_matmul_bias_relu_kernel, has_residual=res is not None),
        out_shape=jax.ShapeDtypeStruct((mp, nout), ACT_DTYPE),
        grid_spec=pltpu.PrefetchScalarGridSpec(
            num_scalar_prefetch=0,
            grid=grid,
            in_specs=in_specs,
            out_specs=pl.BlockSpec((tm, tn), lambda i, j, k: (i, j)),
            scratch_shapes=[pltpu.VMEM((tm, tn), jnp.float32)]),
        compiler_params=pltpu.CompilerParams(
            dimension_semantics=("parallel", "parallel", "arbitrary"),
            vmem_limit_bytes=_VMEM_LIMIT),
        cost_estimate=pl.CostEstimate(flops=2 * mp * kdim * nout,
                                      transcendentals=0,
                                      bytes_accessed=int(bytes_accessed)),
    )(*args)
    return out[:m] if mp != m else out


def _add_kernel(a_ref, b_ref, o_ref, *, upcast):
    if upcast:  # v5e and older: no bf16 VALU
        o_ref[...] = (a_ref[...].astype(jnp.float32)
                      + b_ref[...].astype(jnp.float32)).astype(o_ref.dtype)
    else:       # v6e/v7x: add directly in bf16
        o_ref[...] = a_ref[...] + b_ref[...]


def _elementwise_add(a, b):
    m, cp = a.shape
    mp, tm = _pick_m_tiles(m)
    tn = _pick_n_tile(cp)
    if mp != m:
        a = jnp.pad(a, ((0, mp - m), (0, 0)))
        b = jnp.pad(b, ((0, mp - m), (0, 0)))
    grid = (mp // tm, cp // tn)
    out = pl.pallas_call(
        functools.partial(_add_kernel, upcast=not _BF16_VPU),
        out_shape=jax.ShapeDtypeStruct((mp, cp), a.dtype),
        grid_spec=pltpu.PrefetchScalarGridSpec(
            num_scalar_prefetch=0,
            grid=grid,
            in_specs=[pl.BlockSpec((tm, tn), lambda i, j: (i, j)),
                      pl.BlockSpec((tm, tn), lambda i, j: (i, j))],
            out_specs=pl.BlockSpec((tm, tn), lambda i, j: (i, j))),
        compiler_params=pltpu.CompilerParams(
            dimension_semantics=("parallel", "parallel"),
            vmem_limit_bytes=_VMEM_LIMIT),
    )(a, b)
    return out[:m] if mp != m else out


# --------------------------- Node manifestations -------------------------------

def _im2col_3x3(x_nhwc):
    """(N,H,W,Cin) real channels -> (N*H*W, pad(9*Cin,128)) bf16, tap-major then channel."""
    n, h, w, c = x_nhwc.shape
    xp = jnp.pad(x_nhwc, ((0, 0), (1, 1), (1, 1), (0, 0)))
    taps = [xp[:, ki:ki + h, kj:kj + w, :] for ki in range(3) for kj in range(3)]
    patches = jnp.concatenate(taps, axis=-1)                    # (N,H,W,9*Cin)
    kfold = _pad_to_lane(9 * c)
    if kfold != 9 * c:
        patches = jnp.pad(patches, ((0, 0), (0, 0), (0, 0), (0, kfold - 9 * c)))
    return patches.reshape(n * h * w, kfold).astype(ACT_DTYPE)


class Conv3x3ReLU:
    """3x3 conv (stride 1, pad 1) + bias + ReLU; PyTorch weight layout (Cout, Cin, 3, 3).
    Lowered to a single tiled MXU matmul with the 9 taps folded into K."""

    def __init__(self, weight, bias):
        cout, cin, kh, kw = weight.shape
        assert (kh, kw) == (3, 3)
        self.cin, self.cout = cin, cout
        kfold = _pad_to_lane(9 * cin)
        coutp = _pad_to_lane(cout)
        # (Cout,Cin,3,3) -> (3,3,Cin,Cout) -> (9*Cin, Cout); row = (ki*3+kj)*Cin + ci
        w = jnp.transpose(weight, (2, 3, 1, 0)).reshape(9 * cin, cout)
        w = jnp.pad(w, ((0, kfold - 9 * cin), (0, coutp - cout)))
        self.w = w.astype(ACT_DTYPE)
        self.b = jnp.pad(bias, (0, coutp - cout)).reshape(1, coutp).astype(jnp.float32)
        self.coutp = coutp

    def __call__(self, x, residual=None):
        assert x.c == self.cin
        cp = x.slab.shape[1]
        x4 = x.slab.reshape(x.n, x.h, x.w, cp)
        if cp != self.cin:
            x4 = x4[..., :self.cin]          # build im2col from real channels only
        cols = _im2col_3x3(x4)
        res = None
        if residual is not None:
            assert residual.c == self.cout
            assert (residual.n, residual.h, residual.w) == (x.n, x.h, x.w)
            res = residual.slab
        out = _matmul_bias_relu(cols, self.w, self.b, res)
        return Activation(out, x.n, x.h, x.w, self.cout)


class Conv1x1ReLU:
    """1x1 conv + bias + ReLU; PyTorch weight layout (Cout, Cin, 1, 1)."""

    def __init__(self, weight, bias):
        cout, cin, kh, kw = weight.shape
        assert (kh, kw) == (1, 1)
        self.cin, self.cout = cin, cout
        cinp, coutp = _pad_to_lane(cin), _pad_to_lane(cout)
        w = jnp.transpose(weight.reshape(cout, cin), (1, 0))         # (Cin, Cout)
        w = jnp.pad(w, ((0, cinp - cin), (0, coutp - cout)))
        self.w = w.astype(ACT_DTYPE)
        self.b = jnp.pad(bias, (0, coutp - cout)).reshape(1, coutp).astype(jnp.float32)
        self.coutp = coutp

    def __call__(self, x, residual=None):
        assert x.c == self.cin
        res = None
        if residual is not None:
            assert residual.c == self.cout
            assert (residual.n, residual.h, residual.w) == (x.n, x.h, x.w)
            res = residual.slab
        out = _matmul_bias_relu(x.slab, self.w, self.b, res)
        return Activation(out, x.n, x.h, x.w, self.cout)


class AddNode:
    def __call__(self, a, b):
        assert (a.n, a.h, a.w, a.c) == (b.n, b.h, b.w, b.c)
        return Activation(_elementwise_add(a.slab, b.slab), a.n, a.h, a.w, a.c)


class _FusedConvAdd:
    """A conv node whose downstream Add has been folded into its Pallas epilogue."""

    def __init__(self, conv):
        self.conv = conv

    def __call__(self, *args):
        *conv_inputs, residual = args
        return self.conv(*conv_inputs, residual=residual)


class _DeadNode:
    """Placeholder for a node whose compute was fused into its consumer."""

    def __call__(self, *args):
        return None


# ------------------------- _FinalModelManifestation ----------------------------

class FinalModelManifestation:
    """Faithful port of the PyTorch module's forward pass (with optional Add fusion)."""

    def __init__(self, node_manifestations, inputs, outputs, incoming, fuse_add=True):
        self.manifestations = list(node_manifestations)
        self.inputs = inputs
        self.outputs = list(outputs)
        self.incoming = [list(inc) for inc in incoming]
        if fuse_add:
            self._fuse_add_epilogues()

    def _fuse_add_epilogues(self):
        """Fold Add(conv, other) into the conv's epilogue when the conv has a single
        consumer and is not a module output (semantics-preserving; Add is commutative)."""
        n = len(self.manifestations)
        use_count = [0] * n
        for inc_list in self.incoming:
            for inc in inc_list:
                if inc >= 0:
                    use_count[inc] += 1
        output_set = set(self.outputs)
        for idx in range(n):
            if not isinstance(self.manifestations[idx], AddNode):
                continue
            if len(self.incoming[idx]) != 2:
                continue
            a, b = self.incoming[idx]
            for cand, other in ((b, a), (a, b)):
                if (cand >= 0
                        and isinstance(self.manifestations[cand], (Conv3x3ReLU, Conv1x1ReLU))
                        and cand not in output_set
                        and use_count[cand] == 1):
                    conv = self.manifestations[cand]
                    self.manifestations[idx] = _FusedConvAdd(conv)
                    self.incoming[idx] = list(self.incoming[cand]) + [other]
                    self.manifestations[cand] = _DeadNode()
                    self.incoming[cand] = []
                    break

    def __call__(self, inputs):
        # Layout conversion only at the module boundary; DAG runs on lane-dense NHWC slabs.
        internal_inputs = [_to_internal(x) for x in inputs]
        manifested_outputs = [None for _ in range(len(self.manifestations))]
        for idx, manifestation in enumerate(self.manifestations):
            man_inputs = [
                manifested_outputs[inc] if inc >= 0 else internal_inputs[-inc - 1]
                for inc in self.incoming[idx]
            ]
            manifested_outputs[idx] = manifestation(*man_inputs)
        return tuple(_to_external(manifested_outputs[o]) for o in self.outputs)


# ------------------------------ reference (jnp) ---------------------------------

def _ref_conv3x3_relu(x, w, b):
    out = jax.lax.conv_general_dilated(
        x, w, window_strides=(1, 1), padding="SAME",
        dimension_numbers=("NCHW", "OIHW", "NCHW"))
    return jnp.maximum(out + b.reshape(1, -1, 1, 1), 0.0)


def _ref_conv1x1_relu(x, w, b):
    out = jax.lax.conv_general_dilated(
        x, w, window_strides=(1, 1), padding="VALID",
        dimension_numbers=("NCHW", "OIHW", "NCHW"))
    return jnp.maximum(out + b.reshape(1, -1, 1, 1), 0.0)


# ------------------------------------ main ---------------------------------------

if __name__ == "__main__":
    key = jax.random.PRNGKey(0)
    k_x0, k_x1, k_w3, k_b3, k_w1, k_b1 = jax.random.split(key, 6)

    N, C, H, W = 2, 4, 16, 16
    COUT = 4  # equal channels so the Add nodes are well-defined

    # external inputs (NCHW, like PyTorch)
    x0 = jax.random.normal(k_x0, (N, C, H, W), dtype=jnp.float32)
    x1 = jax.random.normal(k_x1, (N, C, H, W), dtype=jnp.float32)

    # parameters (PyTorch conv weight layouts)
    w3 = 0.1 * jax.random.normal(k_w3, (COUT, C, 3, 3), dtype=jnp.float32)
    b3 = 0.1 * jax.random.normal(k_b3, (COUT,), dtype=jnp.float32)
    w1 = 0.1 * jax.random.normal(k_w1, (COUT, C, 1, 1), dtype=jnp.float32)
    b1 = 0.1 * jax.random.normal(k_b1, (COUT,), dtype=jnp.float32)

    # DAG:
    #   node 0: Conv3x3ReLU(external input 0)   incoming = [-1]
    #   node 1: Conv1x1ReLU(external input 1)   incoming = [-2]   (fused into node 2's epilogue)
    #   node 2: Add(node 0, node 1)             incoming = [0, 1]
    #   node 3: Add(node 2, node 0)             incoming = [2, 0] (not fusable -> add kernel)
    # outputs = [3, 2, 0]
    model = FinalModelManifestation(
        node_manifestations=[Conv3x3ReLU(w3, b3), Conv1x1ReLU(w1, b1), AddNode(), AddNode()],
        inputs=[0, 1],
        outputs=[3, 2, 0],
        incoming=[[-1], [-2], [0, 1], [2, 0]],
    )

    run = jax.jit(lambda a, b: model([a, b]))
    outs = jax.block_until_ready(run(x0, x1))

    # cross-check against a pure-JAX f32 reference of the same DAG
    ref0 = _ref_conv3x3_relu(x0, w3, b3)
    ref1 = _ref_conv1x1_relu(x1, w1, b1)
    ref2 = ref0 + ref1
    ref3 = ref2 + ref0
    ref_outs = (ref3, ref2, ref0)

    # bf16 MXU inputs / bf16 activation storage with f32 accumulation -> loosened tolerance
    for got, ref in zip(outs, ref_outs):
        np.testing.assert_allclose(np.asarray(got), np.asarray(ref), rtol=2e-2, atol=5e-2)

    print("KERNEL_OK")
</pallas_src>

<mosaic_0001>
module attributes {stable_mosaic.version = 11 : i64} {
  func.func @_matmul_bias_relu_kernel(%arg0: i32, %arg1: i32, %arg2: i32, %arg3: memref<256x128xbf16, #tpu.memory_space<vmem>>, %arg4: memref<128x128xbf16, #tpu.memory_space<vmem>>, %arg5: memref<1x128xf32, #tpu.memory_space<vmem>>, %arg6: memref<256x128xbf16, #tpu.memory_space<vmem>>, %arg7: memref<256x128xf32, #tpu.memory_space<vmem>>) attributes {dimension_semantics = [#tpu.dimension_semantics<parallel>, #tpu.dimension_semantics<parallel>, #tpu.dimension_semantics<arbitrary>], iteration_bounds = array<i64: 2, 1, 1>, scalar_prefetch = 0 : i64, scratch_operands = 1 : i64, tpu.core_type = #tpu.core_type<tc>, window_params = [{transform_indices = @transform_0, window_bounds = array<i64: 256, 128>}, {transform_indices = @transform_1, window_bounds = array<i64: 128, 128>}, {transform_indices = @transform_2, window_bounds = array<i64: 1, 128>}, {transform_indices = @transform_3, window_bounds = array<i64: 256, 128>}]} {
    %c0_i32 = arith.constant 0 : i32
    %0 = arith.cmpi eq, %arg2, %c0_i32 : i32
    %1 = arith.extui %0 : i1 to i32
    %c0_i32_0 = arith.constant 0 : i32
    %2 = arith.cmpi ne, %1, %c0_i32_0 : i32
    scf.if %2 {
      %cst_10 = arith.constant 0.000000e+00 : f32
      %12 = vector.broadcast %cst_10 : f32 to vector<256x128xf32>
      %c0_11 = arith.constant 0 : index
      %c0_12 = arith.constant 0 : index
      %13 = vector.load %arg7[%c0_11, %c0_12] : memref<256x128xf32, #tpu.memory_space<vmem>>, vector<256x128xf32>
      tpu.vector_store %arg7[%c0_11, %c0_12], %12 {strides = array<i32>} : memref<256x128xf32, #tpu.memory_space<vmem>>, vector<256x128xf32>,
    } else {
    }
    %c0 = arith.constant 0 : index
    %c0_1 = arith.constant 0 : index
    %3 = vector.load %arg7[%c0, %c0_1] : memref<256x128xf32, #tpu.memory_space<vmem>>, vector<256x128xf32>
    %c0_2 = arith.constant 0 : index
    %c0_3 = arith.constant 0 : index
    %4 = vector.load %arg3[%c0_2, %c0_3] : memref<256x128xbf16, #tpu.memory_space<vmem>>, vector<256x128xbf16>
    %c0_4 = arith.constant 0 : index
    %c0_5 = arith.constant 0 : index
    %5 = vector.load %arg4[%c0_4, %c0_5] : memref<128x128xbf16, #tpu.memory_space<vmem>>, vector<128x128xbf16>
    %cst = arith.constant dense<0.000000e+00> : vector<256x128xf32>
    %6 = tpu.matmul %4, %5, %cst {dimension_numbers = #tpu.dot_dimension_numbers<[1], [0], [0], [1], [0, 0, 1, 1], [], []>} : vector<256x128xbf16>, vector<128x128xbf16>, vector<256x128xf32> -> vector<256x128xf32>
    %7 = arith.addf %3, %6 : vector<256x128xf32>
    %c0_6 = arith.constant 0 : index
    %c0_7 = arith.constant 0 : index
    %8 = vector.load %arg7[%c0_6, %c0_7] : memref<256x128xf32, #tpu.memory_space<vmem>>, vector<256x128xf32>
    tpu.vector_store %arg7[%c0_6, %c0_7], %7 {strides = array<i32>} : memref<256x128xf32, #tpu.memory_space<vmem>>, vector<256x128xf32>,
    %c0_i32_8 = arith.constant 0 : i32
    %9 = arith.cmpi eq, %arg2, %c0_i32_8 : i32
    %10 = arith.extui %9 : i1 to i32
    %c0_i32_9 = arith.constant 0 : i32
    %11 = arith.cmpi ne, %10, %c0_i32_9 : i32
    scf.if %11 {
      %c0_10 = arith.constant 0 : index
      %c0_11 = arith.constant 0 : index
      %12 = vector.load %arg7[%c0_10, %c0_11] : memref<256x128xf32, #tpu.memory_space<vmem>>, vector<256x128xf32>
      %c0_12 = arith.constant 0 : index
      %c0_13 = arith.constant 0 : index
      %13 = vector.load %arg5[%c0_12, %c0_13] : memref<1x128xf32, #tpu.memory_space<vmem>>, vector<1x128xf32>
      %14 = vector.broadcast %13 : vector<1x128xf32> to vector<256x128xf32>
      %15 = arith.addf %12, %14 : vector<256x128xf32>
      %cst_14 = arith.constant 0.000000e+00 : f32
      %16 = vector.broadcast %cst_14 : f32 to vector<256x128xf32>
      %17 = arith.maximumf %15, %16 : vector<256x128xf32>
      %18 = arith.truncf %17 : vector<256x128xf32> to vector<256x128xbf16>
      %c0_15 = arith.constant 0 : index
      %c0_16 = arith.constant 0 : index
      %19 = vector.load %arg6[%c0_15, %c0_16] : memref<256x128xbf16, #tpu.memory_space<vmem>>, vector<256x128xbf16>
      tpu.vector_store %arg6[%c0_15, %c0_16], %18 {strides = array<i32>} : memref<256x128xbf16, #tpu.memory_space<vmem>>, vector<256x128xbf16>,
    } else {
    }
    return
  }
  func.func @transform_0(%arg0: i32, %arg1: i32, %arg2: i32) -> (i32, i32) {
    %c0_i32 = arith.constant 0 : i32
    return %arg0, %arg2 : i32, i32
  }
  func.func @transform_1(%arg0: i32, %arg1: i32, %arg2: i32) -> (i32, i32) {
    %c0_i32 = arith.constant 0 : i32
    return %arg2, %arg1 : i32, i32
  }
  func.func @transform_2(%arg0: i32, %arg1: i32, %arg2: i32) -> (i32, i32) {
    %c0_i32 = arith.constant 0 : i32
    %c0_i32_0 = arith.constant 0 : i32
    return %c0_i32, %arg1 : i32, i32
  }
  func.func @transform_3(%arg0: i32, %arg1: i32, %arg2: i32) -> (i32, i32) {
    %c0_i32 = arith.constant 0 : i32
    return %arg0, %arg1 : i32, i32
  }
}

module attributes {stable_mosaic.version = 11 : i64} {
  func.func @_matmul_bias_relu_kernel(%arg0: i32, %arg1: i32, %arg2: i32, %arg3: memref<256x128xbf16, #tpu.memory_space<vmem>>, %arg4: memref<128x128xbf16, #tpu.memory_space<vmem>>, %arg5: memref<1x128xf32, #tpu.memory_space<vmem>>, %arg6: memref<256x128xbf16, #tpu.memory_space<vmem>>, %arg7: memref<256x128xbf16, #tpu.memory_space<vmem>>, %arg8: memref<256x128xf32, #tpu.memory_space<vmem>>) attributes {dimension_semantics = [#tpu.dimension_semantics<parallel>, #tpu.dimension_semantics<parallel>, #tpu.dimension_semantics<arbitrary>], iteration_bounds = array<i64: 2, 1, 1>, scalar_prefetch = 0 : i64, scratch_operands = 1 : i64, tpu.core_type = #tpu.core_type<tc>, window_params = [{transform_indices = @transform_0, window_bounds = array<i64: 256, 128>}, {transform_indices = @transform_1, window_bounds = array<i64: 128, 128>}, {transform_indices = @transform_2, window_bounds = array<i64: 1, 128>}, {transform_indices = @transform_3, window_bounds = array<i64: 256, 128>}, {transform_indices = @transform_4, window_bounds = array<i64: 256, 128>}]} {
    %c0_i32 = arith.constant 0 : i32
    %0 = arith.cmpi eq, %arg2, %c0_i32 : i32
    %1 = arith.extui %0 : i1 to i32
    %c0_i32_0 = arith.constant 0 : i32
    %2 = arith.cmpi ne, %1, %c0_i32_0 : i32
    scf.if %2 {
      %cst_10 = arith.constant 0.000000e+00 : f32
      %12 = vector.broadcast %cst_10 : f32 to vector<256x128xf32>
      %c0_11 = arith.constant 0 : index
      %c0_12 = arith.constant 0 : index
      %13 = vector.load %arg8[%c0_11, %c0_12] : memref<256x128xf32, #tpu.memory_space<vmem>>, vector<256x128xf32>
      tpu.vector_store %arg8[%c0_11, %c0_12], %12 {strides = array<i32>} : memref<256x128xf32, #tpu.memory_space<vmem>>, vector<256x128xf32>,
    } else {
    }
    %c0 = arith.constant 0 : index
    %c0_1 = arith.constant 0 : index
    %3 = vector.load %arg8[%c0, %c0_1] : memref<256x128xf32, #tpu.memory_space<vmem>>, vector<256x128xf32>
    %c0_2 = arith.constant 0 : index
    %c0_3 = arith.constant 0 : index
    %4 = vector.load %arg3[%c0_2, %c0_3] : memref<256x128xbf16, #tpu.memory_space<vmem>>, vector<256x128xbf16>
    %c0_4 = arith.constant 0 : index
    %c0_5 = arith.constant 0 : index
    %5 = vector.load %arg4[%c0_4, %c0_5] : memref<128x128xbf16, #tpu.memory_space<vmem>>, vector<128x128xbf16>
    %cst = arith.constant dense<0.000000e+00> : vector<256x128xf32>
    %6 = tpu.matmul %4, %5, %cst {dimension_numbers = #tpu.dot_dimension_numbers<[1], [0], [0], [1], [0, 0, 1, 1], [], []>} : vector<256x128xbf16>, vector<128x128xbf16>, vector<256x128xf32> -> vector<256x128xf32>
    %7 = arith.addf %3, %6 : vector<256x128xf32>
    %c0_6 = arith.constant 0 : index
    %c0_7 = arith.constant 0 : index
    %8 = vector.load %arg8[%c0_6, %c0_7] : memref<256x128xf32, #tpu.memory_space<vmem>>, vector<256x128xf32>
    tpu.vector_store %arg8[%c0_6, %c0_7], %7 {strides = array<i32>} : memref<256x128xf32, #tpu.memory_space<vmem>>, vector<256x128xf32>,
    %c0_i32_8 = arith.constant 0 : i32
    %9 = arith.cmpi eq, %arg2, %c0_i32_8 : i32
    %10 = arith.extui %9 : i1 to i32
    %c0_i32_9 = arith.constant 0 : i32
    %11 = arith.cmpi ne, %10, %c0_i32_9 : i32
    scf.if %11 {
      %c0_10 = arith.constant 0 : index
      %c0_11 = arith.constant 0 : index
      %12 = vector.load %arg8[%c0_10, %c0_11] : memref<256x128xf32, #tpu.memory_space<vmem>>, vector<256x128xf32>
      %c0_12 = arith.constant 0 : index
      %c0_13 = arith.constant 0 : index
      %13 = vector.load %arg5[%c0_12, %c0_13] : memref<1x128xf32, #tpu.memory_space<vmem>>, vector<1x128xf32>
      %14 = vector.broadcast %13 : vector<1x128xf32> to vector<256x128xf32>
      %15 = arith.addf %12, %14 : vector<256x128xf32>
      %cst_14 = arith.constant 0.000000e+00 : f32
      %16 = vector.broadcast %cst_14 : f32 to vector<256x128xf32>
      %17 = arith.maximumf %15, %16 : vector<256x128xf32>
      %c0_15 = arith.constant 0 : index
      %c0_16 = arith.constant 0 : index
      %18 = vector.load %arg6[%c0_15, %c0_16] : memref<256x128xbf16, #tpu.memory_space<vmem>>, vector<256x128xbf16>
      %19 = arith.extf %18 : vector<256x128xbf16> to vector<256x128xf32>
      %20 = arith.addf %17, %19 : vector<256x128xf32>
      %21 = arith.truncf %20 : vector<256x128xf32> to vector<256x128xbf16>
      %c0_17 = arith.constant 0 : index
      %c0_18 = arith.constant 0 : index
      %22 = vector.load %arg7[%c0_17, %c0_18] : memref<256x128xbf16, #tpu.memory_space<vmem>>, vector<256x128xbf16>
      tpu.vector_store %arg7[%c0_17, %c0_18], %21 {strides = array<i32>} : memref<256x128xbf16, #tpu.memory_space<vmem>>, vector<256x128xbf16>,
    } else {
    }
    return
  }
  func.func @transform_0(%arg0: i32, %arg1: i32, %arg2: i32) -> (i32, i32) {
    %c0_i32 = arith.constant 0 : i32
    return %arg0, %arg2 : i32, i32
  }
  func.func @transform_1(%arg0: i32, %arg1: i32, %arg2: i32) -> (i32, i32) {
    %c0_i32 = arith.constant 0 : i32
    return %arg2, %arg1 : i32, i32
  }
  func.func @transform_2(%arg0: i32, %arg1: i32, %arg2: i32) -> (i32, i32) {
    %c0_i32 = arith.constant 0 : i32
    %c0_i32_0 = arith.constant 0 : i32
    return %c0_i32, %arg1 : i32, i32
  }
  func.func @transform_3(%arg0: i32, %arg1: i32, %arg2: i32) -> (i32, i32) {
    %c0_i32 = arith.constant 0 : i32
    return %arg0, %arg1 : i32, i32
  }
  func.func @transform_4(%arg0: i32, %arg1: i32, %arg2: i32) -> (i32, i32) {
    %c0_i32 = arith.constant 0 : i32
    return %arg0, %arg1 : i32, i32
  }
}

module attributes {stable_mosaic.version = 11 : i64} {
  func.func @_add_kernel(%arg0: i32, %arg1: i32, %arg2: memref<256x128xbf16, #tpu.memory_space<vmem>>, %arg3: memref<256x128xbf16, #tpu.memory_space<vmem>>, %arg4: memref<256x128xbf16, #tpu.memory_space<vmem>>) attributes {dimension_semantics = [#tpu.dimension_semantics<parallel>, #tpu.dimension_semantics<parallel>], iteration_bounds = array<i64: 2, 1>, scalar_prefetch = 0 : i64, scratch_operands = 0 : i64, tpu.core_type = #tpu.core_type<tc>, window_params = [{transform_indices = @transform_0, window_bounds = array<i64: 256, 128>}, {transform_indices = @transform_1, window_bounds = array<i64: 256, 128>}, {transform_indices = @transform_2, window_bounds = array<i64: 256, 128>}]} {
    %c0 = arith.constant 0 : index
    %c0_0 = arith.constant 0 : index
    %0 = vector.load %arg2[%c0, %c0_0] : memref<256x128xbf16, #tpu.memory_space<vmem>>, vector<256x128xbf16>
    %c0_1 = arith.constant 0 : index
    %c0_2 = arith.constant 0 : index
    %1 = vector.load %arg3[%c0_1, %c0_2] : memref<256x128xbf16, #tpu.memory_space<vmem>>, vector<256x128xbf16>
    %2 = arith.addf %0, %1 : vector<256x128xbf16>
    %c0_3 = arith.constant 0 : index
    %c0_4 = arith.constant 0 : index
    %3 = vector.load %arg4[%c0_3, %c0_4] : memref<256x128xbf16, #tpu.memory_space<vmem>>, vector<256x128xbf16>
    tpu.vector_store %arg4[%c0_3, %c0_4], %2 {strides = array<i32>} : memref<256x128xbf16, #tpu.memory_space<vmem>>, vector<256x128xbf16>,
    return
  }
  func.func @transform_0(%arg0: i32, %arg1: i32) -> (i32, i32) {
    %c0_i32 = arith.constant 0 : i32
    return %arg0, %arg1 : i32, i32
  }
  func.func @transform_1(%arg0: i32, %arg1: i32) -> (i32, i32) {
    %c0_i32 = arith.constant 0 : i32
    return %arg0, %arg1 : i32, i32
  }
  func.func @transform_2(%arg0: i32, %arg1: i32) -> (i32, i32) {
    %c0_i32 = arith.constant 0 : i32
    return %arg0, %arg1 : i32, i32
  }
}

</mosaic_0001>

<llo_original>
// kernel: _lambda_.5
$region0: #{_lambda_.5}
  #allocation0 [shape = 'u32[]', space=smem, size = 0x4, offset = 0x4, fixed_abs, tag = 'smem constant byte address 0x4 - core index']
  #allocation1 [shape = 'u32[72,128]{1,0:T(1,128)}', space=vmem, size = 0x9000, scoped, tag = 'internal scratch']
  %s0 = inlined_call_operand.vmem [shape: bf16[512,128], index: 0, kind: input, shape index: {}]
  %s1 = inlined_call_operand.vmem [shape: bf16[512,128], index: 1, kind: input, shape index: {}]
  %s2 = inlined_call_operand.vmem [shape: bf16[512,128], index: 2, kind: output, shape index: {}]
  %s3 = sld [smem:[#allocation0]]
  $region41: #{_lambda_.5} parent=0
    _
  %s5 = ssub.s32 1, %s3
  %s6 = scalar_select 0, %s5, %s3
  loop: start=0, step=1, limit=4
  $region2: #{_lambda_.5} parent=0 // loop_pre_header
    _
  $region3: #{_lambda_.5} parent=0 // loop_header
    %s8 = sphi 0, %s12
    %p9 = scmp.ge.s32.totalorder %s8, 4
    %s15 = sphi 0, %s27
    %s16 = sphi 0, %s23
    %s17 = sphi 0, %s15
    %s18 = sphi 0, %s16
    %s19 = sphi 0, %s17
    %s20 = sphi 0, %s18
    %s32 = sphi 0, %s34
    %s35 = sphi 0, %s32
    %s36 = sphi 0, %s35
    %s52 = sphi 0, %s36
    %s60 = sphi 0, %s62
    %s63 = sphi 0, %s60
    %s64 = sphi 0, %s63
    %s80 = sphi 0, %s64
    %s88 = sphi 0, %s90
    %s91 = sphi 0, %s88
    %s92 = sphi 0, %s91
    %s108 = sphi 0, %s92
  $region4: #{_lambda_.5} parent=0 // loop_header_branch
    %11 = sbr.rel (%p9) target = $region8
  $region5: #{_lambda_.5} parent=0 // loop_body
    %s13 = ssub.s32 %s8, 1
    %s14 = ssub.s32 %s8, 2
    %s21 = sadd.s32 1, %s16
    %p22 = scmp.ge.s32.totalorder %s21, 1
    %s23 = scalar_select %p22, 0, %s21
    %s24 = sadd.s32 1, %s15
    %s25 = scalar_select %p22, %s24, %s15
    %p26 = scmp.ge.s32.totalorder %s25, 2
    %s27 = scalar_select %p26, 0, %s25
    %s28 = ssub.s32 %s15, %s27
    %s29 = ssub.s32 %s16, %s23
    %s30 = sor.u32 %s28, %s29
    %p31 = scmp.eq.s32.totalorder %s30, 0
    %s33 = sadd.s32 %s32, 1
    %s34 = scalar_select %p31, %s32, %s33
    %p37 = pneg %p31
    %p38 = scmp.eq.s32.totalorder %s8, 1
    %p39 = por %p37, %p38
    %p40 = scmp.ne.s32.totalorder %s32, %s35
    %p41 = scmp.eq.s32.totalorder %s8, 0
    %p42 = por %p40, %p41
    %p43 = scmp.ne.s32.totalorder %s32, %s35
    %p44 = scmp.eq.s32.totalorder %s13, 1
    %p45 = por %p43, %p44
    %p46 = scmp.ne.s32.totalorder %s35, %s36
    %p47 = scmp.eq.s32.totalorder %s13, 0
    %p48 = por %p46, %p47
    %p49 = scmp.ne.s32.totalorder %s35, %s36
    %p50 = scmp.eq.s32.totalorder %s14, 1
    %p51 = por %p49, %p50
    %p53 = scmp.ne.s32.totalorder %s36, %s52
    %p54 = scmp.eq.s32.totalorder %s14, 0
    %p55 = por %p53, %p54
    %s56 = ssub.s32 %s15, %s27
    %s57 = ssub.s32 %s16, %s23
    %s58 = sor.u32 %s56, %s57
    %p59 = scmp.eq.s32.totalorder %s58, 0
    %s61 = sadd.s32 %s60, 1
    %s62 = scalar_select %p59, %s60, %s61
    %p65 = pneg %p59
    %p66 = scmp.eq.s32.totalorder %s8, 1
    %p67 = por %p65, %p66
    %p68 = scmp.ne.s32.totalorder %s60, %s63
    %p69 = scmp.eq.s32.totalorder %s8, 0
    %p70 = por %p68, %p69
    %p71 = scmp.ne.s32.totalorder %s60, %s63
    %p72 = scmp.eq.s32.totalorder %s13, 1
    %p73 = por %p71, %p72
    %p74 = scmp.ne.s32.totalorder %s63, %s64
    %p75 = scmp.eq.s32.totalorder %s13, 0
    %p76 = por %p74, %p75
    %p77 = scmp.ne.s32.totalorder %s63, %s64
    %p78 = scmp.eq.s32.totalorder %s14, 1
    %p79 = por %p77, %p78
    %p81 = scmp.ne.s32.totalorder %s64, %s80
    %p82 = scmp.eq.s32.totalorder %s14, 0
    %p83 = por %p81, %p82
    %s84 = ssub.s32 %s15, %s27
    %s85 = ssub.s32 %s16, %s23
    %s86 = sor.u32 %s84, %s85
    %p87 = scmp.eq.s32.totalorder %s86, 0
    %s89 = sadd.s32 %s88, 1
    %s90 = scalar_select %p87, %s88, %s89
    %p93 = pneg %p87
    %p94 = scmp.eq.s32.totalorder %s8, 1
    %p95 = por %p93, %p94
    %p96 = scmp.ne.s32.totalorder %s88, %s91
    %p97 = scmp.eq.s32.totalorder %s8, 0
    %p98 = por %p96, %p97
    %p99 = scmp.ne.s32.totalorder %s88, %s91
    %p100 = scmp.eq.s32.totalorder %s13, 1
    %p101 = por %p99, %p100
    %p102 = scmp.ne.s32.totalorder %s91, %s92
    %p103 = scmp.eq.s32.totalorder %s13, 0
    %p104 = por %p102, %p103
    %p105 = scmp.ne.s32.totalorder %s91, %s92
    %p106 = scmp.eq.s32.totalorder %s14, 1
    %p107 = por %p105, %p106
    %p109 = scmp.ne.s32.totalorder %s92, %s108
    %p110 = scmp.eq.s32.totalorder %s14, 0
    %p111 = por %p109, %p110
    %p112 = scmp.le.s32.totalorder 1, %s8
    %p113 = scmp.lt.s32.totalorder %s8, 3
    %p114 = pnand %p112, %p113
    %p115 = pneg %p114
    // Predicated region
    $region9: #{_lambda_.5} parent=5 // pred_check
      _
    $region10: #{_lambda_.5} parent=5 // pred_check_branch
      %117 = sbr.rel (%p114) target = $region12
    $region11: #{_lambda_.5} parent=5 // pred_region
      %s118 = ssub.s32 %s8, 1
    $region12: #{_lambda_.5} parent=5 // pred_fallthru
      _
    %p119 = scmp.lt.s32.totalorder %s8, 2
    // Predicated region
    $region13: #{_lambda_.5} parent=5 // pred_check
      %p120 = pneg %p119
    $region14: #{_lambda_.5} parent=5 // pred_check_branch
      %122 = sbr.rel (%p120) target = $region16
    $region15: #{_lambda_.5} parent=5 // pred_region
      // Predicated region
      $region17: #{_lambda_.5} parent=15 // pred_check
        %p123 = pneg %p42
      $region18: #{_lambda_.5} parent=15 // pred_check_branch
        %125 = sbr.rel (%p123) target = $region20
      $region19: #{_lambda_.5} parent=15 // pred_region
        %s126 = smul.u32 32, %s15
        %p127 = scmp.lt.s32.totalorder %s126, 63
        %s128 = scalar_select %p127, %s126, 63
        %p129 = scmp.lt.s32.totalorder %s16, 0
        %s130 = scalar_select %p129, %s16, 0
        %s131 = sadd.s32 %s130, %s128
        %s132 = smul.addr %s131, 4
        %s133 = scalar_lea.vmem %s0, %s132
        %s134 = smul.u32 32, %s15
      $region20: #{_lambda_.5} parent=15 // pred_fallthru
        _
      // Predicated region
      $region21: #{_lambda_.5} parent=15 // pred_check
        %p135 = pneg %p70
      $region22: #{_lambda_.5} parent=15 // pred_check_branch
        %137 = sbr.rel (%p135) target = $region24
      $region23: #{_lambda_.5} parent=15 // pred_region
        %s138 = smul.u32 32, %s15
        %p139 = scmp.lt.s32.totalorder %s138, 63
        %s140 = scalar_select %p139, %s138, 63
        %p141 = scmp.lt.s32.totalorder %s16, 0
        %s142 = scalar_select %p141, %s16, 0
        %s143 = sadd.s32 %s142, %s140
        %s144 = smul.addr %s143, 4
        %s145 = scalar_lea.vmem %s1, %s144
        %s146 = smul.u32 32, %s15
      $region24: #{_lambda_.5} parent=15 // pred_fallthru
        _
    $region16: #{_lambda_.5} parent=5 // pred_fallthru
      _
    %p147 = scmp.le.s32.totalorder 1, %s8
    %p148 = scmp.lt.s32.totalorder %s8, 3
    %p149 = pnand %p147, %p148
    %p150 = pneg %p149
    // Predicated region
    $region25: #{_lambda_.5} parent=5 // pred_check
      _
    $region26: #{_lambda_.5} parent=5 // pred_check_branch
      %152 = sbr.rel (%p149) target = $region28
    $region27: #{_lambda_.5} parent=5 // pred_region
      %s153 = ssub.s32 %s8, 1
      %s154 = smul.u32 32, %s17
      %p155 = scmp.lt.s32.totalorder %s154, 63
      %s156 = scalar_select %p155, %s154, 63
      %p157 = scmp.lt.s32.totalorder %s18, 0
      %s158 = scalar_select %p157, %s18, 0
      %s159 = sadd.s32 %s158, %s156
      %s160 = smul.addr %s159, 4
      %s161 = scalar_lea.vmem %s0, %s160
      %p162 = pneg %p48
      %p163 = pneg %p45
      %s164 = smul.u32 32, %s17
      %p165 = scmp.lt.s32.totalorder %s164, 63
      %s166 = scalar_select %p165, %s164, 63
      %p167 = scmp.lt.s32.totalorder %s18, 0
      %s168 = scalar_select %p167, %s18, 0
      %s169 = sadd.s32 %s168, %s166
      %s170 = smul.addr %s169, 4
      %s171 = scalar_lea.vmem %s1, %s170
      %p172 = pneg %p76
      %p173 = pneg %p73
      %p174 = pneg %p104
      %p175 = pneg %p101
      %s176 = smul.u32 32, %s17
      %p177 = scmp.lt.s32.totalorder %s176, 63
      %s178 = scalar_select %p177, %s176, 63
      %p179 = scmp.lt.s32.totalorder %s18, 0
      %s180 = scalar_select %p179, %s18, 0
      %s181 = sadd.s32 %s180, %s178
      %s182 = smul.addr %s181, 4
      %s183 = scalar_lea.vmem %s2, %s182
      %s184 = smul.u32 32, %s17
      %p185 = scmp.lt.s32.totalorder %s184, 63
      %s186 = scalar_select %p185, %s184, 63
      %p187 = scmp.lt.s32.totalorder %s18, 0
      %s188 = scalar_select %p187, %s18, 0
      %s189 = sadd.s32 %s188, %s186
      %s190 = smul.addr %s189, 4
      %s191 = scalar_lea.vmem %s0, %s190
      %s192 = smul.u32 32, %s17
      %s193 = smul.u32 32, %s17
      %p194 = scmp.lt.s32.totalorder %s193, 63
      %s195 = scalar_select %p194, %s193, 63
      %p196 = scmp.lt.s32.totalorder %s18, 0
      %s197 = scalar_select %p196, %s18, 0
      %s198 = sadd.s32 %s197, %s195
      %s199 = smul.addr %s198, 4
      %s200 = scalar_lea.vmem %s1, %s199
      %s201 = smul.u32 32, %s17
      %s202 = smul.u32 32, %s17
      %p203 = scmp.lt.s32.totalorder %s202, 63
      %s204 = scalar_select %p203, %s202, 63
      %p205 = scmp.lt.s32.totalorder %s18, 0
      %s206 = scalar_select %p205, %s18, 0
      %s207 = sadd.s32 %s206, %s204
      %s208 = smul.addr %s207, 4
      %s209 = scalar_lea.vmem %s2, %s208
      %s210 = smul.u32 32, %s17
      %v211 = vld [vmem:[%s191] sm:$0xf]
      %v212 = vld [vmem:[%s191 + $0x4] sm:$0xf]
      %v213 = vld [vmem:[%s191 + $0x8] sm:$0xf]
      %v214 = vld [vmem:[%s191 + $0xc] sm:$0xf]
      %v215 = vld [vmem:[%s191 + $0x10] sm:$0xf]
      %v216 = vld [vmem:[%s191 + $0x14] sm:$0xf]
      %v217 = vld [vmem:[%s191 + $0x18] sm:$0xf]
      %v218 = vld [vmem:[%s191 + $0x1c] sm:$0xf]
      %v219 = vld [vmem:[%s191 + $0x20] sm:$0xf]
      %v220 = vld [vmem:[%s191 + $0x24] sm:$0xf]
      %v221 = vld [vmem:[%s191 + $0x28] sm:$0xf]
      %v222 = vld [vmem:[%s191 + $0x2c] sm:$0xf]
      %v223 = vld [vmem:[%s191 + $0x30] sm:$0xf]
      %v224 = vld [vmem:[%s191 + $0x34] sm:$0xf]
      %v225 = vld [vmem:[%s191 + $0x38] sm:$0xf]
      %v226 = vld [vmem:[%s191 + $0x3c] sm:$0xf]
      %v227 = vld [vmem:[%s191 + $0x40] sm:$0xf]
      %v228 = vld [vmem:[%s191 + $0x44] sm:$0xf]
      %v229 = vld [vmem:[%s191 + $0x48] sm:$0xf]
      %v230 = vld [vmem:[%s191 + $0x4c] sm:$0xf]
      %v231 = vld [vmem:[%s191 + $0x50] sm:$0xf]
      %v232 = vld [vmem:[%s191 + $0x54] sm:$0xf]
      %v233 = vld [vmem:[%s191 + $0x58] sm:$0xf]
      %v234 = vld [vmem:[%s191 + $0x5c] sm:$0xf]
      %v235 = vld [vmem:[%s191 + $0x60] sm:$0xf]
      %v236 = vld [vmem:[%s191 + $0x64] sm:$0xf]
      %v237 = vld [vmem:[%s191 + $0x68] sm:$0xf]
      %v238 = vld [vmem:[%s191 + $0x6c] sm:$0xf]
      %v239 = vld [vmem:[%s191 + $0x70] sm:$0xf]
      %v240 = vld [vmem:[%s191 + $0x74] sm:$0xf]
      %v241 = vld [vmem:[%s191 + $0x78] sm:$0xf]
      %v242 = vld [vmem:[%s191 + $0x7c] sm:$0xf]
      %v243 = vld [vmem:[%s200] sm:$0xf]
      %v244 = vld [vmem:[%s200 + $0x4] sm:$0xf]
      %v245 = vld [vmem:[%s200 + $0x8] sm:$0xf]
      %v246 = vld [vmem:[%s200 + $0xc] sm:$0xf]
      %v247 = vld [vmem:[%s200 + $0x10] sm:$0xf]
      %v248 = vld [vmem:[%s200 + $0x14] sm:$0xf]
      %v249 = vld [vmem:[%s200 + $0x18] sm:$0xf]
      %v250 = vld [vmem:[%s200 + $0x1c] sm:$0xf]
      %v251 = vld [vmem:[%s200 + $0x20] sm:$0xf]
      %v252 = vld [vmem:[%s200 + $0x24] sm:$0xf]
      %v253 = vld [vmem:[%s200 + $0x28] sm:$0xf]
      %v254 = vld [vmem:[%s200 + $0x2c] sm:$0xf]
      %v255 = vld [vmem:[%s200 + $0x30] sm:$0xf]
      %v256 = vld [vmem:[%s200 + $0x34] sm:$0xf]
      %v257 = vld [vmem:[%s200 + $0x38] sm:$0xf]
      %v258 = vld [vmem:[%s200 + $0x3c] sm:$0xf]
      %v259 = vld [vmem:[%s200 + $0x40] sm:$0xf]
      %v260 = vld [vmem:[%s200 + $0x44] sm:$0xf]
      %v261 = vld [vmem:[%s200 + $0x48] sm:$0xf]
      %v262 = vld [vmem:[%s200 + $0x4c] sm:$0xf]
      %v263 = vld [vmem:[%s200 + $0x50] sm:$0xf]
      %v264 = vld [vmem:[%s200 + $0x54] sm:$0xf]
      %v265 = vld [vmem:[%s200 + $0x58] sm:$0xf]
      %v266 = vld [vmem:[%s200 + $0x5c] sm:$0xf]
      %v267 = vld [vmem:[%s200 + $0x60] sm:$0xf]
      %v268 = vld [vmem:[%s200 + $0x64] sm:$0xf]
      %v269 = vld [vmem:[%s200 + $0x68] sm:$0xf]
      %v270 = vld [vmem:[%s200 + $0x6c] sm:$0xf]
      %v271 = vld [vmem:[%s200 + $0x70] sm:$0xf]
      %v272 = vld [vmem:[%s200 + $0x74] sm:$0xf]
      %v273 = vld [vmem:[%s200 + $0x78] sm:$0xf]
      %v274 = vld [vmem:[%s200 + $0x7c] sm:$0xf]
      %v275 = vunpack.c.l.bf16 %v211
      %v276 = vunpack.c.l.bf16 %v212
      %v277 = vunpack.c.l.bf16 %v213
      %v278 = vunpack.c.l.bf16 %v214
      %v279 = vunpack.c.l.bf16 %v215
      %v280 = vunpack.c.l.bf16 %v216
      %v281 = vunpack.c.l.bf16 %v217
      %v282 = vunpack.c.l.bf16 %v218
      %v283 = vunpack.c.l.bf16 %v219
      %v284 = vunpack.c.l.bf16 %v220
      %v285 = vunpack.c.l.bf16 %v221
      %v286 = vunpack.c.l.bf16 %v222
      %v287 = vunpack.c.l.bf16 %v223
      %v288 = vunpack.c.l.bf16 %v224
      %v289 = vunpack.c.l.bf16 %v225
      %v290 = vunpack.c.l.bf16 %v226
      %v291 = vunpack.c.l.bf16 %v227
      %v292 = vunpack.c.l.bf16 %v228
      %v293 = vunpack.c.l.bf16 %v229
      %v294 = vunpack.c.l.bf16 %v230
      %v295 = vunpack.c.l.bf16 %v231
      %v296 = vunpack.c.l.bf16 %v232
      %v297 = vunpack.c.l.bf16 %v233
      %v298 = vunpack.c.l.bf16 %v234
      %v299 = vunpack.c.l.bf16 %v235
      %v300 = vunpack.c.l.bf16 %v236
      %v301 = vunpack.c.l.bf16 %v237
      %v302 = vunpack.c.l.bf16 %v238
      %v303 = vunpack.c.l.bf16 %v239
      %v304 = vunpack.c.l.bf16 %v240
      %v305 = vunpack.c.l.bf16 %v241
      %v306 = vunpack.c.l.bf16 %v242
      %v307 = vunpack.c.l.bf16 %v243
      %v308 = vunpack.c.l.bf16 %v244
      %v309 = vunpack.c.l.bf16 %v245
      %v310 = vunpack.c.l.bf16 %v246
      %v311 = vunpack.c.l.bf16 %v247
      %v312 = vunpack.c.l.bf16 %v248
      %v313 = vunpack.c.l.bf16 %v249
      %v314 = vunpack.c.l.bf16 %v250
      %v315 = vunpack.c.l.bf16 %v251
      %v316 = vunpack.c.l.bf16 %v252
      %v317 = vunpack.c.l.bf16 %v253
      %v318 = vunpack.c.l.bf16 %v254
      %v319 = vunpack.c.l.bf16 %v255
      %v320 = vunpack.c.l.bf16 %v256
      %v321 = vunpack.c.l.bf16 %v257
      %v322 = vunpack.c.l.bf16 %v258
      %v323 = vunpack.c.l.bf16 %v259
      %v324 = vunpack.c.l.bf16 %v260
      %v325 = vunpack.c.l.bf16 %v261
      %v326 = vunpack.c.l.bf16 %v262
      %v327 = vunpack.c.l.bf16 %v263
      %v328 = vunpack.c.l.bf16 %v264
      %v329 = vunpack.c.l.bf16 %v265
      %v330 = vunpack.c.l.bf16 %v266
      %v331 = vunpack.c.l.bf16 %v267
      %v332 = vunpack.c.l.bf16 %v268
      %v333 = vunpack.c.l.bf16 %v269
      %v334 = vunpack.c.l.bf16 %v270
      %v335 = vunpack.c.l.bf16 %v271
      %v336 = vunpack.c.l.bf16 %v272
      %v337 = vunpack.c.l.bf16 %v273
      %v338 = vunpack.c.l.bf16 %v274
      %v339 = vadd.f32 %v275, %v307
      %v340 = vadd.f32 %v276, %v308
      %v341 = vadd.f32 %v277, %v309
      %v342 = vadd.f32 %v278, %v310
      %v343 = vadd.f32 %v279, %v311
      %v344 = vadd.f32 %v280, %v312
      %v345 = vadd.f32 %v281, %v313
      %v346 = vadd.f32 %v282, %v314
      %v347 = vadd.f32 %v283, %v315
      %v348 = vadd.f32 %v284, %v316
      %v349 = vadd.f32 %v285, %v317
      %v350 = vadd.f32 %v286, %v318
      %v351 = vadd.f32 %v287, %v319
      %v352 = vadd.f32 %v288, %v320
      %v353 = vadd.f32 %v289, %v321
      %v354 = vadd.f32 %v290, %v322
      %v355 = vadd.f32 %v291, %v323
      %v356 = vadd.f32 %v292, %v324
      %v357 = vadd.f32 %v293, %v325
      %v358 = vadd.f32 %v294, %v326
      %v359 = vadd.f32 %v295, %v327
      %v360 = vadd.f32 %v296, %v328
      %v361 = vadd.f32 %v297, %v329
      %v362 = vadd.f32 %v298, %v330
      %v363 = vadd.f32 %v299, %v331
      %v364 = vadd.f32 %v300, %v332
      %v365 = vadd.f32 %v301, %v333
      %v366 = vadd.f32 %v302, %v334
      %v367 = vadd.f32 %v303, %v335
      %v368 = vadd.f32 %v304, %v336
      %v369 = vadd.f32 %v305, %v337
      %v370 = vadd.f32 %v306, %v338
      %v371 = vpack.c.bf16 %v339, %v339
      %v372 = vpack.c.bf16 %v340, %v340
      %v373 = vpack.c.bf16 %v341, %v341
      %v374 = vpack.c.bf16 %v342, %v342
      %v375 = vpack.c.bf16 %v343, %v343
      %v376 = vpack.c.bf16 %v344, %v344
      %v377 = vpack.c.bf16 %v345, %v345
      %v378 = vpack.c.bf16 %v346, %v346
      %v379 = vpack.c.bf16 %v347, %v347
      %v380 = vpack.c.bf16 %v348, %v348
      %v381 = vpack.c.bf16 %v349, %v349
      %v382 = vpack.c.bf16 %v350, %v350
      %v383 = vpack.c.bf16 %v351, %v351
      %v384 = vpack.c.bf16 %v352, %v352
      %v385 = vpack.c.bf16 %v353, %v353
      %v386 = vpack.c.bf16 %v354, %v354
      %v387 = vpack.c.bf16 %v355, %v355
      %v388 = vpack.c.bf16 %v356, %v356
      %v389 = vpack.c.bf16 %v357, %v357
      %v390 = vpack.c.bf16 %v358, %v358
      %v391 = vpack.c.bf16 %v359, %v359
      %v392 = vpack.c.bf16 %v360, %v360
      %v393 = vpack.c.bf16 %v361, %v361
      %v394 = vpack.c.bf16 %v362, %v362
      %v395 = vpack.c.bf16 %v363, %v363
      %v396 = vpack.c.bf16 %v364, %v364
      %v397 = vpack.c.bf16 %v365, %v365
      %v398 = vpack.c.bf16 %v366, %v366
      %v399 = vpack.c.bf16 %v367, %v367
      %v400 = vpack.c.bf16 %v368, %v368
      %v401 = vpack.c.bf16 %v369, %v369
      %v402 = vpack.c.bf16 %v370, %v370
      %403 = vst [vmem:[%s209] sm:$0xf] %v371
      %404 = vst [vmem:[%s209 + $0x4] sm:$0xf] %v372
      %405 = vst [vmem:[%s209 + $0x8] sm:$0xf] %v373
      %406 = vst [vmem:[%s209 + $0xc] sm:$0xf] %v374
      %407 = vst [vmem:[%s209 + $0x10] sm:$0xf] %v375
      %408 = vst [vmem:[%s209 + $0x14] sm:$0xf] %v376
      %409 = vst [vmem:[%s209 + $0x18] sm:$0xf] %v377
      %410 = vst [vmem:[%s209 + $0x1c] sm:$0xf] %v378
      %411 = vst [vmem:[%s209 + $0x20] sm:$0xf] %v379
      %412 = vst [vmem:[%s209 + $0x24] sm:$0xf] %v380
      %413 = vst [vmem:[%s209 + $0x28] sm:$0xf] %v381
      %414 = vst [vmem:[%s209 + $0x2c] sm:$0xf] %v382
      %415 = vst [vmem:[%s209 + $0x30] sm:$0xf] %v383
      %416 = vst [vmem:[%s209 + $0x34] sm:$0xf] %v384
      %417 = vst [vmem:[%s209 + $0x38] sm:$0xf] %v385
      %418 = vst [vmem:[%s209 + $0x3c] sm:$0xf] %v386
      %419 = vst [vmem:[%s209 + $0x40] sm:$0xf] %v387
      %420 = vst [vmem:[%s209 + $0x44] sm:$0xf] %v388
      %421 = vst [vmem:[%s209 + $0x48] sm:$0xf] %v389
      %422 = vst [vmem:[%s209 + $0x4c] sm:$0xf] %v390
      %423 = vst [vmem:[%s209 + $0x50] sm:$0xf] %v391
      %424 = vst [vmem:[%s209 + $0x54] sm:$0xf] %v392
      %425 = vst [vmem:[%s209 + $0x58] sm:$0xf] %v393
      %426 = vst [vmem:[%s209 + $0x5c] sm:$0xf] %v394
      %427 = vst [vmem:[%s209 + $0x60] sm:$0xf] %v395
      %428 = vst [vmem:[%s209 + $0x64] sm:$0xf] %v396
      %429 = vst [vmem:[%s209 + $0x68] sm:$0xf] %v397
      %430 = vst [vmem:[%s209 + $0x6c] sm:$0xf] %v398
      %431 = vst [vmem:[%s209 + $0x70] sm:$0xf] %v399
      %432 = vst [vmem:[%s209 + $0x74] sm:$0xf] %v400
      %433 = vst [vmem:[%s209 + $0x78] sm:$0xf] %v401
      %434 = vst [vmem:[%s209 + $0x7c] sm:$0xf] %v402
      %s435 = smul.u32 32, %s17
      %p436 = scmp.lt.s32.totalorder %s435, 63
      %s437 = scalar_select %p436, %s435, 63
      %p438 = scmp.lt.s32.totalorder %s18, 0
      %s439 = scalar_select %p438, %s18, 0
      %s440 = sadd.s32 %s439, %s437
      %s441 = smul.addr %s440, 4
      %s442 = scalar_lea.vmem %s2, %s441
      // Predicated region
      $region29: #{_lambda_.5} parent=27 // pred_check
        %p443 = pneg %p101
      $region30: #{_lambda_.5} parent=27 // pred_check_branch
        %445 = sbr.rel (%p443) target = $region32
      $region31: #{_lambda_.5} parent=27 // pred_region
        %s446 = smul.u32 32, %s17
      $region32: #{_lambda_.5} parent=27 // pred_fallthru
        _
    $region28: #{_lambda_.5} parent=5 // pred_fallthru
      _
    %p447 = scmp.le.s32.totalorder 2, %s8
    // Predicated region
    $region33: #{_lambda_.5} parent=5 // pred_check
      %p448 = pneg %p447
    $region34: #{_lambda_.5} parent=5 // pred_check_branch
      %450 = sbr.rel (%p448) target = $region36
    $region35: #{_lambda_.5} parent=5 // pred_region
      %s451 = ssub.s32 %s8, 2
      // Predicated region
      $region37: #{_lambda_.5} parent=35 // pred_check
        %p452 = pneg %p107
      $region38: #{_lambda_.5} parent=35 // pred_check_branch
        %454 = sbr.rel (%p452) target = $region40
      $region39: #{_lambda_.5} parent=35 // pred_region
        %s455 = smul.u32 32, %s19
        %p456 = scmp.lt.s32.totalorder %s455, 63
        %s457 = scalar_select %p456, %s455, 63
        %p458 = scmp.lt.s32.totalorder %s20, 0
        %s459 = scalar_select %p458, %s20, 0
        %s460 = sadd.s32 %s459, %s457
        %s461 = smul.addr %s460, 4
        %s462 = scalar_lea.vmem %s2, %s461
      $region40: #{_lambda_.5} parent=35 // pred_fallthru
        _
    $region36: #{_lambda_.5} parent=5 // pred_fallthru
      _
  $region6: #{_lambda_.5} parent=0 // loop_footer
    %s12 = sadd.s32 1, %s8
  $region7: #{_lambda_.5} parent=0 // loop_footer_branch
    %7 = sbr.rel target = $region3
  $region8: #{_lambda_.5} parent=0 // loop_exit
    _

// kernel: _lambda_.3
$region0: #{_lambda_.3}
  #allocation0 [shape = 'u32[]', space=smem, size = 0x4, offset = 0x4, fixed_abs, tag = 'smem constant byte address 0x4 - core index']
  #allocation1 [shape = 'u32[72,128]{1,0:T(1,128)}', space=vmem, size = 0x9000, scoped, tag = 'internal scratch']
  #allocation2 [shape = 'f32[256,128]{1,0:T(8,128)}', space=vmem, size = 0x20000, scoped, tag = 'scratch operand']
  %s0 = inlined_call_operand.vmem [shape: bf16[512,128], index: 0, kind: input, shape index: {}]
  %s1 = inlined_call_operand.vmem [shape: bf16[128,128], index: 1, kind: input, shape index: {}]
  %s2 = inlined_call_operand.vmem [shape: f32[1,128], index: 2, kind: input, shape index: {}]
  %s3 = inlined_call_operand.vmem [shape: bf16[512,128], index: 3, kind: output, shape index: {}]
  %s4 = sld [smem:[#allocation0]]
  $region53: #{_lambda_.3} parent=0
    _
  %s6 = ssub.s32 1, %s4
  %s7 = scalar_select 0, %s6, %s4
  loop: start=0, step=1, limit=4
  $region2: #{_lambda_.3} parent=0 // loop_pre_header
    _
  $region3: #{_lambda_.3} parent=0 // loop_header
    %s9 = sphi 0, %s13
    %p10 = scmp.ge.s32.totalorder %s9, 4
    %s16 = sphi 0, %s35
    %s17 = sphi 0, %s31
    %s18 = sphi 0, %s27
    %s19 = sphi 0, %s16
    %s20 = sphi 0, %s17
    %s21 = sphi 0, %s18
    %s22 = sphi 0, %s19
    %s23 = sphi 0, %s20
    %s24 = sphi 0, %s21
    %s40 = sphi 0, %s42
    %s43 = sphi 0, %s40
    %s44 = sphi 0, %s43
    %s60 = sphi 0, %s44
    %s68 = sphi 0, %s70
    %s71 = sphi 0, %s68
    %s72 = sphi 0, %s71
    %s88 = sphi 0, %s72
    %s94 = sphi 0, %s96
    %s97 = sphi 0, %s94
    %s98 = sphi 0, %s97
    %s114 = sphi 0, %s98
    %s122 = sphi 0, %s124
    %s125 = sphi 0, %s122
    %s126 = sphi 0, %s125
    %s142 = sphi 0, %s126
  $region4: #{_lambda_.3} parent=0 // loop_header_branch
    %12 = sbr.rel (%p10) target = $region8
  $region5: #{_lambda_.3} parent=0 // loop_body
    %s14 = ssub.s32 %s9, 1
    %s15 = ssub.s32 %s9, 2
    %s25 = sadd.s32 1, %s18
    %p26 = scmp.ge.s32.totalorder %s25, 1
    %s27 = scalar_select %p26, 0, %s25
    %s28 = sadd.s32 1, %s17
    %s29 = scalar_select %p26, %s28, %s17
    %p30 = scmp.ge.s32.totalorder %s29, 1
    %s31 = scalar_select %p30, 0, %s29
    %s32 = sadd.s32 1, %s16
    %s33 = scalar_select %p30, %s32, %s16
    %p34 = scmp.ge.s32.totalorder %s33, 2
    %s35 = scalar_select %p34, 0, %s33
    %s36 = ssub.s32 %s16, %s35
    %s37 = ssub.s32 %s18, %s27
    %s38 = sor.u32 %s36, %s37
    %p39 = scmp.eq.s32.totalorder %s38, 0
    %s41 = sadd.s32 %s40, 1
    %s42 = scalar_select %p39, %s40, %s41
    %p45 = pneg %p39
    %p46 = scmp.eq.s32.totalorder %s9, 1
    %p47 = por %p45, %p46
    %p48 = scmp.ne.s32.totalorder %s40, %s43
    %p49 = scmp.eq.s32.totalorder %s9, 0
    %p50 = por %p48, %p49
    %p51 = scmp.ne.s32.totalorder %s40, %s43
    %p52 = scmp.eq.s32.totalorder %s14, 1
    %p53 = por %p51, %p52
    %p54 = scmp.ne.s32.totalorder %s43, %s44
    %p55 = scmp.eq.s32.totalorder %s14, 0
    %p56 = por %p54, %p55
    %p57 = scmp.ne.s32.totalorder %s43, %s44
    %p58 = scmp.eq.s32.totalorder %s15, 1
    %p59 = por %p57, %p58
    %p61 = scmp.ne.s32.totalorder %s44, %s60
    %p62 = scmp.eq.s32.totalorder %s15, 0
    %p63 = por %p61, %p62
    %s64 = ssub.s32 %s18, %s27
    %s65 = ssub.s32 %s17, %s31
    %s66 = sor.u32 %s64, %s65
    %p67 = scmp.eq.s32.totalorder %s66, 0
    %s69 = sadd.s32 %s68, 1
    %s70 = scalar_select %p67, %s68, %s69
    %p73 = pneg %p67
    %p74 = scmp.eq.s32.totalorder %s9, 1
    %p75 = por %p73, %p74
    %p76 = scmp.ne.s32.totalorder %s68, %s71
    %p77 = scmp.eq.s32.totalorder %s9, 0
    %p78 = por %p76, %p77
    %p79 = scmp.ne.s32.totalorder %s68, %s71
    %p80 = scmp.eq.s32.totalorder %s14, 1
    %p81 = por %p79, %p80
    %p82 = scmp.ne.s32.totalorder %s71, %s72
    %p83 = scmp.eq.s32.totalorder %s14, 0
    %p84 = por %p82, %p83
    %p85 = scmp.ne.s32.totalorder %s71, %s72
    %p86 = scmp.eq.s32.totalorder %s15, 1
    %p87 = por %p85, %p86
    %p89 = scmp.ne.s32.totalorder %s72, %s88
    %p90 = scmp.eq.s32.totalorder %s15, 0
    %p91 = por %p89, %p90
    %s92 = ssub.s32 %s17, %s31
    %p93 = scmp.eq.s32.totalorder %s92, 0
    %s95 = sadd.s32 %s94, 1
    %s96 = scalar_select %p93, %s94, %s95
    %p99 = pneg %p93
    %p100 = scmp.eq.s32.totalorder %s9, 1
    %p101 = por %p99, %p100
    %p102 = scmp.ne.s32.totalorder %s94, %s97
    %p103 = scmp.eq.s32.totalorder %s9, 0
    %p104 = por %p102, %p103
    %p105 = scmp.ne.s32.totalorder %s94, %s97
    %p106 = scmp.eq.s32.totalorder %s14, 1
    %p107 = por %p105, %p106
    %p108 = scmp.ne.s32.totalorder %s97, %s98
    %p109 = scmp.eq.s32.totalorder %s14, 0
    %p110 = por %p108, %p109
    %p111 = scmp.ne.s32.totalorder %s97, %s98
    %p112 = scmp.eq.s32.totalorder %s15, 1
    %p113 = por %p111, %p112
    %p115 = scmp.ne.s32.totalorder %s98, %s114
    %p116 = scmp.eq.s32.totalorder %s15, 0
    %p117 = por %p115, %p116
    %s118 = ssub.s32 %s16, %s35
    %s119 = ssub.s32 %s17, %s31
    %s120 = sor.u32 %s118, %s119
    %p121 = scmp.eq.s32.totalorder %s120, 0
    %s123 = sadd.s32 %s122, 1
    %s124 = scalar_select %p121, %s122, %s123
    %p127 = pneg %p121
    %p128 = scmp.eq.s32.totalorder %s9, 1
    %p129 = por %p127, %p128
    %p130 = scmp.ne.s32.totalorder %s122, %s125
    %p131 = scmp.eq.s32.totalorder %s9, 0
    %p132 = por %p130, %p131
    %p133 = scmp.ne.s32.totalorder %s122, %s125
    %p134 = scmp.eq.s32.totalorder %s14, 1
    %p135 = por %p133, %p134
    %p136 = scmp.ne.s32.totalorder %s125, %s126
    %p137 = scmp.eq.s32.totalorder %s14, 0
    %p138 = por %p136, %p137
    %p139 = scmp.ne.s32.totalorder %s125, %s126
    %p140 = scmp.eq.s32.totalorder %s15, 1
    %p141 = por %p139, %p140
    %p143 = scmp.ne.s32.totalorder %s126, %s142
    %p144 = scmp.eq.s32.totalorder %s15, 0
    %p145 = por %p143, %p144
    %p146 = scmp.le.s32.totalorder 1, %s9
    %p147 = scmp.lt.s32.totalorder %s9, 3
    %p148 = pnand %p146, %p147
    %p149 = pneg %p148
    // Predicated region
    $region9: #{_lambda_.3} parent=5 // pred_check
      _
    $region10: #{_lambda_.3} parent=5 // pred_check_branch
      %151 = sbr.rel (%p148) target = $region12
    $region11: #{_lambda_.3} parent=5 // pred_region
      %s152 = ssub.s32 %s9, 1
      // Predicated region
      $region13: #{_lambda_.3} parent=11 // pred_check
        %p153 = pneg %p84
      $region14: #{_lambda_.3} parent=11 // pred_check_branch
        %155 = sbr.rel (%p153) target = $region16
      $region15: #{_lambda_.3} parent=11 // pred_region
        %s156 = smul.u32 16, %s21
        %p157 = scmp.lt.s32.totalorder %s156, 15
        %s158 = scalar_select %p157, %s156, 15
        %p159 = scmp.lt.s32.totalorder %s20, 0
        %s160 = scalar_select %p159, %s20, 0
        %s161 = sadd.s32 %s160, %s158
        %s162 = smul.addr %s161, 4
        %s163 = scalar_lea.vmem %s1, %s162
        %s164 = smul.u32 16, %s21
      $region16: #{_lambda_.3} parent=11 // pred_fallthru
        _
      // Predicated region
      $region17: #{_lambda_.3} parent=11 // pred_check
        %p165 = pneg %p110
      $region18: #{_lambda_.3} parent=11 // pred_check_branch
        %167 = sbr.rel (%p165) target = $region20
      $region19: #{_lambda_.3} parent=11 // pred_region
        %p168 = scmp.lt.s32.totalorder %s20, 0
        %s169 = scalar_select %p168, %s20, 0
        %s170 = scalar_lea.vmem %s2, %s169
      $region20: #{_lambda_.3} parent=11 // pred_fallthru
        _
    $region12: #{_lambda_.3} parent=5 // pred_fallthru
      _
    %p171 = scmp.lt.s32.totalorder %s9, 2
    // Predicated region
    $region21: #{_lambda_.3} parent=5 // pred_check
      %p172 = pneg %p171
    $region22: #{_lambda_.3} parent=5 // pred_check_branch
      %174 = sbr.rel (%p172) target = $region24
    $region23: #{_lambda_.3} parent=5 // pred_region
      // Predicated region
      $region25: #{_lambda_.3} parent=23 // pred_check
        %p175 = pneg %p50
      $region26: #{_lambda_.3} parent=23 // pred_check_branch
        %177 = sbr.rel (%p175) target = $region28
      $region27: #{_lambda_.3} parent=23 // pred_region
        %s178 = smul.u32 32, %s16
        %p179 = scmp.lt.s32.totalorder %s178, 63
        %s180 = scalar_select %p179, %s178, 63
        %p181 = scmp.lt.s32.totalorder %s18, 0
        %s182 = scalar_select %p181, %s18, 0
        %s183 = sadd.s32 %s182, %s180
        %s184 = smul.addr %s183, 4
        %s185 = scalar_lea.vmem %s0, %s184
        %s186 = smul.u32 32, %s16
      $region28: #{_lambda_.3} parent=23 // pred_fallthru
        _
    $region24: #{_lambda_.3} parent=5 // pred_fallthru
      _
    %p187 = scmp.le.s32.totalorder 1, %s9
    %p188 = scmp.lt.s32.totalorder %s9, 3
    %p189 = pnand %p187, %p188
    %p190 = pneg %p189
    // Predicated region
    $region29: #{_lambda_.3} parent=5 // pred_check
      _
    $region30: #{_lambda_.3} parent=5 // pred_check_branch
      %192 = sbr.rel (%p189) target = $region32
    $region31: #{_lambda_.3} parent=5 // pred_region
      %s193 = ssub.s32 %s9, 1
      %s194 = smul.u32 32, %s19
      %p195 = scmp.lt.s32.totalorder %s194, 63
      %s196 = scalar_select %p195, %s194, 63
      %p197 = scmp.lt.s32.totalorder %s21, 0
      %s198 = scalar_select %p197, %s21, 0
      %s199 = sadd.s32 %s198, %s196
      %s200 = smul.addr %s199, 4
      %s201 = scalar_lea.vmem %s0, %s200
      %p202 = pneg %p56
      %p203 = pneg %p53
      %s204 = smul.u32 16, %s21
      %p205 = scmp.lt.s32.totalorder %s204, 15
      %s206 = scalar_select %p205, %s204, 15
      %p207 = scmp.lt.s32.totalorder %s20, 0
      %s208 = scalar_select %p207, %s20, 0
      %s209 = sadd.s32 %s208, %s206
      %s210 = smul.addr %s209, 4
      %s211 = scalar_lea.vmem %s1, %s210
      %p212 = pneg %p84
      %p213 = pneg %p81
      %p214 = scmp.lt.s32.totalorder %s20, 0
      %s215 = scalar_select %p214, %s20, 0
      %s216 = scalar_lea.vmem %s2, %s215
      %p217 = pneg %p110
      %p218 = pneg %p107
      %p219 = pneg %p138
      %p220 = pneg %p135
      %s221 = smul.u32 32, %s19
      %p222 = scmp.lt.s32.totalorder %s221, 63
      %s223 = scalar_select %p222, %s221, 63
      %p224 = scmp.lt.s32.totalorder %s20, 0
      %s225 = scalar_select %p224, %s20, 0
      %s226 = sadd.s32 %s225, %s223
      %s227 = smul.addr %s226, 4
      %s228 = scalar_lea.vmem %s3, %s227
      %s229 = smul.u32 32, %s19
      %p230 = scmp.lt.s32.totalorder %s229, 63
      %s231 = scalar_select %p230, %s229, 63
      %p232 = scmp.lt.s32.totalorder %s21, 0
      %s233 = scalar_select %p232, %s21, 0
      %s234 = sadd.s32 %s233, %s231
      %s235 = smul.addr %s234, 4
      %s236 = scalar_lea.vmem %s0, %s235
      %s237 = smul.u32 32, %s19
      %s238 = smul.u32 16, %s21
      %p239 = scmp.lt.s32.totalorder %s238, 15
      %s240 = scalar_select %p239, %s238, 15
      %p241 = scmp.lt.s32.totalorder %s20, 0
      %s242 = scalar_select %p241, %s20, 0
      %s243 = sadd.s32 %s242, %s240
      %s244 = smul.addr %s243, 4
      %s245 = scalar_lea.vmem %s1, %s244
      %s246 = smul.u32 16, %s21
      %p247 = scmp.lt.s32.totalorder %s20, 0
      %s248 = scalar_select %p247, %s20, 0
      %s249 = scalar_lea.vmem %s2, %s248
      %s250 = smul.u32 32, %s19
      %p251 = scmp.lt.s32.totalorder %s250, 63
      %s252 = scalar_select %p251, %s250, 63
      %p253 = scmp.lt.s32.totalorder %s20, 0
      %s254 = scalar_select %p253, %s20, 0
      %s255 = sadd.s32 %s254, %s252
      %s256 = smul.addr %s255, 4
      %s257 = scalar_lea.vmem %s3, %s256
      %s258 = smul.u32 32, %s19
      %p259 = scmp.eq.s32.totalorder %s21, 0
      // Predicated region
      $region33: #{_lambda_.3} parent=31 // pred_check
        %p260 = pneg %p259
      $region34: #{_lambda_.3} parent=31 // pred_check_branch
        %262 = sbr.rel (%p260) target = $region36
      $region35: #{_lambda_.3} parent=31 // pred_region
        %263 = vst [vmem:[#allocation2] sm:$0xff] 0.0
        %264 = vst [vmem:[#allocation2 + $0x8] sm:$0xff] 0.0
        %265 = vst [vmem:[#allocation2 + $0x10] sm:$0xff] 0.0
        %266 = vst [vmem:[#allocation2 + $0x18] sm:$0xff] 0.0
        %267 = vst [vmem:[#allocation2 + $0x20] sm:$0xff] 0.0
        %268 = vst [vmem:[#allocation2 + $0x28] sm:$0xff] 0.0
        %269 = vst [vmem:[#allocation2 + $0x30] sm:$0xff] 0.0
        %270 = vst [vmem:[#allocation2 + $0x38] sm:$0xff] 0.0
        %271 = vst [vmem:[#allocation2 + $0x40] sm:$0xff] 0.0
        %272 = vst [vmem:[#allocation2 + $0x48] sm:$0xff] 0.0
        %273 = vst [vmem:[#allocation2 + $0x50] sm:$0xff] 0.0
        %274 = vst [vmem:[#allocation2 + $0x58] sm:$0xff] 0.0
        %275 = vst [vmem:[#allocation2 + $0x60] sm:$0xff] 0.0
        %276 = vst [vmem:[#allocation2 + $0x68] sm:$0xff] 0.0
        %277 = vst [vmem:[#allocation2 + $0x70] sm:$0xff] 0.0
        %278 = vst [vmem:[#allocation2 + $0x78] sm:$0xff] 0.0
        %279 = vst [vmem:[#allocation2 + $0x80] sm:$0xff] 0.0
        %280 = vst [vmem:[#allocation2 + $0x88] sm:$0xff] 0.0
        %281 = vst [vmem:[#allocation2 + $0x90] sm:$0xff] 0.0
        %282 = vst [vmem:[#allocation2 + $0x98] sm:$0xff] 0.0
        %283 = vst [vmem:[#allocation2 + $0xa0] sm:$0xff] 0.0
        %284 = vst [vmem:[#allocation2 + $0xa8] sm:$0xff] 0.0
        %285 = vst [vmem:[#allocation2 + $0xb0] sm:$0xff] 0.0
        %286 = vst [vmem:[#allocation2 + $0xb8] sm:$0xff] 0.0
        %287 = vst [vmem:[#allocation2 + $0xc0] sm:$0xff] 0.0
        %288 = vst [vmem:[#allocation2 + $0xc8] sm:$0xff] 0.0
        %289 = vst [vmem:[#allocation2 + $0xd0] sm:$0xff] 0.0
        %290 = vst [vmem:[#allocation2 + $0xd8] sm:$0xff] 0.0
        %291 = vst [vmem:[#allocation2 + $0xe0] sm:$0xff] 0.0
        %292 = vst [vmem:[#allocation2 + $0xe8] sm:$0xff] 0.0
        %293 = vst [vmem:[#allocation2 + $0xf0] sm:$0xff] 0.0
        %294 = vst [vmem:[#allocation2 + $0xf8] sm:$0xff] 0.0
      $region36: #{_lambda_.3} parent=31 // pred_fallthru
        _
      %v295 = vld [vmem:[#allocation2] sm:$0xff]
      %v296 = vld [vmem:[#allocation2 + $0x8] sm:$0xff]
      %v297 = vld [vmem:[#allocation2 + $0x10] sm:$0xff]
      %v298 = vld [vmem:[#allocation2 + $0x18] sm:$0xff]
      %v299 = vld [vmem:[#allocation2 + $0x20] sm:$0xff]
      %v300 = vld [vmem:[#allocation2 + $0x28] sm:$0xff]
      %v301 = vld [vmem:[#allocation2 + $0x30] sm:$0xff]
      %v302 = vld [vmem:[#allocation2 + $0x38] sm:$0xff]
      %v303 = vld [vmem:[#allocation2 + $0x40] sm:$0xff]
      %v304 = vld [vmem:[#allocation2 + $0x48] sm:$0xff]
      %v305 = vld [vmem:[#allocation2 + $0x50] sm:$0xff]
      %v306 = vld [vmem:[#allocation2 + $0x58] sm:$0xff]
      %v307 = vld [vmem:[#allocation2 + $0x60] sm:$0xff]
      %v308 = vld [vmem:[#allocation2 + $0x68] sm:$0xff]
      %v309 = vld [vmem:[#allocation2 + $0x70] sm:$0xff]
      %v310 = vld [vmem:[#allocation2 + $0x78] sm:$0xff]
      %v311 = vld [vmem:[#allocation2 + $0x80] sm:$0xff]
      %v312 = vld [vmem:[#allocation2 + $0x88] sm:$0xff]
      %v313 = vld [vmem:[#allocation2 + $0x90] sm:$0xff]
      %v314 = vld [vmem:[#allocation2 + $0x98] sm:$0xff]
      %v315 = vld [vmem:[#allocation2 + $0xa0] sm:$0xff]
      %v316 = vld [vmem:[#allocation2 + $0xa8] sm:$0xff]
      %v317 = vld [vmem:[#allocation2 + $0xb0] sm:$0xff]
      %v318 = vld [vmem:[#allocation2 + $0xb8] sm:$0xff]
      %v319 = vld [vmem:[#allocation2 + $0xc0] sm:$0xff]
      %v320 = vld [vmem:[#allocation2 + $0xc8] sm:$0xff]
      %v321 = vld [vmem:[#allocation2 + $0xd0] sm:$0xff]
      %v322 = vld [vmem:[#allocation2 + $0xd8] sm:$0xff]
      %v323 = vld [vmem:[#allocation2 + $0xe0] sm:$0xff]
      %v324 = vld [vmem:[#allocation2 + $0xe8] sm:$0xff]
      %v325 = vld [vmem:[#allocation2 + $0xf0] sm:$0xff]
      %v326 = vld [vmem:[#allocation2 + $0xf8] sm:$0xff]
      %v327 = vld [vmem:[%s236] sm:$0xf]
      %v328 = vld [vmem:[%s236 + $0x4] sm:$0xf]
      %v329 = vld [vmem:[%s236 + $0x8] sm:$0xf]
      %v330 = vld [vmem:[%s236 + $0xc] sm:$0xf]
      %v331 = vld [vmem:[%s236 + $0x10] sm:$0xf]
      %v332 = vld [vmem:[%s236 + $0x14] sm:$0xf]
      %v333 = vld [vmem:[%s236 + $0x18] sm:$0xf]
      %v334 = vld [vmem:[%s236 + $0x1c] sm:$0xf]
      %v335 = vld [vmem:[%s236 + $0x20] sm:$0xf]
      %v336 = vld [vmem:[%s236 + $0x24] sm:$0xf]
      %v337 = vld [vmem:[%s236 + $0x28] sm:$0xf]
      %v338 = vld [vmem:[%s236 + $0x2c] sm:$0xf]
      %v339 = vld [vmem:[%s236 + $0x30] sm:$0xf]
      %v340 = vld [vmem:[%s236 + $0x34] sm:$0xf]
      %v341 = vld [vmem:[%s236 + $0x38] sm:$0xf]
      %v342 = vld [vmem:[%s236 + $0x3c] sm:$0xf]
      %v343 = vld [vmem:[%s236 + $0x40] sm:$0xf]
      %v344 = vld [vmem:[%s236 + $0x44] sm:$0xf]
      %v345 = vld [vmem:[%s236 + $0x48] sm:$0xf]
      %v346 = vld [vmem:[%s236 + $0x4c] sm:$0xf]
      %v347 = vld [vmem:[%s236 + $0x50] sm:$0xf]
      %v348 = vld [vmem:[%s236 + $0x54] sm:$0xf]
      %v349 = vld [vmem:[%s236 + $0x58] sm:$0xf]
      %v350 = vld [vmem:[%s236 + $0x5c] sm:$0xf]
      %v351 = vld [vmem:[%s236 + $0x60] sm:$0xf]
      %v352 = vld [vmem:[%s236 + $0x64] sm:$0xf]
      %v353 = vld [vmem:[%s236 + $0x68] sm:$0xf]
      %v354 = vld [vmem:[%s236 + $0x6c] sm:$0xf]
      %v355 = vld [vmem:[%s236 + $0x70] sm:$0xf]
      %v356 = vld [vmem:[%s236 + $0x74] sm:$0xf]
      %v357 = vld [vmem:[%s236 + $0x78] sm:$0xf]
      %v358 = vld [vmem:[%s236 + $0x7c] sm:$0xf]
      %v359 = vld [vmem:[%s245] sm:$0xf]
      %v360 = vld [vmem:[%s245 + $0x4] sm:$0xf]
      %v361 = vld [vmem:[%s245 + $0x8] sm:$0xf]
      %v362 = vld [vmem:[%s245 + $0xc] sm:$0xf]
      %v363 = vld [vmem:[%s245 + $0x10] sm:$0xf]
      %v364 = vld [vmem:[%s245 + $0x14] sm:$0xf]
      %v365 = vld [vmem:[%s245 + $0x18] sm:$0xf]
      %v366 = vld [vmem:[%s245 + $0x1c] sm:$0xf]
      %v367 = vld [vmem:[%s245 + $0x20] sm:$0xf]
      %v368 = vld [vmem:[%s245 + $0x24] sm:$0xf]
      %v369 = vld [vmem:[%s245 + $0x28] sm:$0xf]
      %v370 = vld [vmem:[%s245 + $0x2c] sm:$0xf]
      %v371 = vld [vmem:[%s245 + $0x30] sm:$0xf]
      %v372 = vld [vmem:[%s245 + $0x34] sm:$0xf]
      %v373 = vld [vmem:[%s245 + $0x38] sm:$0xf]
      %v374 = vld [vmem:[%s245 + $0x3c] sm:$0xf]
      %v407 = vunpack.c.l.b16 %v327
      %v408 = vunpack.c.l.b16 %v328
      %v409 = vunpack.c.l.b16 %v329
      %v410 = vunpack.c.l.b16 %v330
      %v411 = vunpack.c.l.b16 %v331
      %v412 = vunpack.c.l.b16 %v332
      %v413 = vunpack.c.l.b16 %v333
      %v414 = vunpack.c.l.b16 %v334
      %v415 = vunpack.c.l.b16 %v335
      %v416 = vunpack.c.l.b16 %v336
      %v417 = vunpack.c.l.b16 %v337
      %v418 = vunpack.c.l.b16 %v338
      %v419 = vunpack.c.l.b16 %v339
      %v420 = vunpack.c.l.b16 %v340
      %v421 = vunpack.c.l.b16 %v341
      %v422 = vunpack.c.l.b16 %v342
      %v423 = vunpack.c.l.b16 %v343
      %v424 = vunpack.c.l.b16 %v344
      %v425 = vunpack.c.l.b16 %v345
      %v426 = vunpack.c.l.b16 %v346
      %v427 = vunpack.c.l.b16 %v347
      %v428 = vunpack.c.l.b16 %v348
      %v429 = vunpack.c.l.b16 %v349
      %v430 = vunpack.c.l.b16 %v350
      %v431 = vunpack.c.l.b16 %v351
      %v432 = vunpack.c.l.b16 %v352
      %v433 = vunpack.c.l.b16 %v353
      %v434 = vunpack.c.l.b16 %v354
      %v435 = vunpack.c.l.b16 %v355
      %v436 = vunpack.c.l.b16 %v356
      %v437 = vunpack.c.l.b16 %v357
      %v438 = vunpack.c.l.b16 %v358
      %v439 = vpack.c.b16 %v408, %v407
      %v440 = vpack.c.b16 %v410, %v409
      %v441 = vpack.c.b16 %v412, %v411
      %v442 = vpack.c.b16 %v414, %v413
      %v443 = vpack.c.b16 %v416, %v415
      %v444 = vpack.c.b16 %v418, %v417
      %v445 = vpack.c.b16 %v420, %v419
      %v446 = vpack.c.b16 %v422, %v421
      %v447 = vpack.c.b16 %v424, %v423
      %v448 = vpack.c.b16 %v426, %v425
      %v449 = vpack.c.b16 %v428, %v427
      %v450 = vpack.c.b16 %v430, %v429
      %v451 = vpack.c.b16 %v432, %v431
      %v452 = vpack.c.b16 %v434, %v433
      %v453 = vpack.c.b16 %v436, %v435
      %v454 = vpack.c.b16 %v438, %v437
      %v487 = vunpack.c.l.b16 %v359
      %v488 = vunpack.c.l.b16 %v360
      %v489 = vunpack.c.l.b16 %v361
      %v490 = vunpack.c.l.b16 %v362
      %v491 = vunpack.c.l.b16 %v363
      %v492 = vunpack.c.l.b16 %v364
      %v493 = vunpack.c.l.b16 %v365
      %v494 = vunpack.c.l.b16 %v366
      %v495 = vunpack.c.l.b16 %v367
      %v496 = vunpack.c.l.b16 %v368
      %v497 = vunpack.c.l.b16 %v369
      %v498 = vunpack.c.l.b16 %v370
      %v499 = vunpack.c.l.b16 %v371
      %v500 = vunpack.c.l.b16 %v372
      %v501 = vunpack.c.l.b16 %v373
      %v502 = vunpack.c.l.b16 %v374
      %v503 = vpack.c.b16 %v488, %v487
      %v504 = vpack.c.b16 %v490, %v489
      %v505 = vpack.c.b16 %v492, %v491
      %v506 = vpack.c.b16 %v494, %v493
      %v507 = vpack.c.b16 %v496, %v495
      %v508 = vpack.c.b16 %v498, %v497
      %v509 = vpack.c.b16 %v500, %v499
      %v510 = vpack.c.b16 %v502, %v501
      %519 = vmatpush.bf16.msra.mxu0 %v510
      %520 = vmatpush.bf16.msra.mxu0 %v509
      %521 = vmatpush.bf16.msra.mxu0 %v508
      %522 = vmatpush.bf16.msra.mxu0 %v507
      %523 = vmatpush.bf16.msra.mxu0 %v506
      %524 = vmatpush.bf16.msra.mxu0 %v505
      %525 = vmatpush.bf16.msra.mxu0 %v504
      %526 = vmatpush.bf16.msra.mxu0 %v503
      %527 = vmatmul.bf16.gmra.mxu0 %v439
      %v528 = vpop.f32.mrf.mxu0
      %v529 = vadd.f32 0.0, %v528
      %v530 = vpop.f32.mrf.mxu0
      %v531 = vadd.f32 0.0, %v530
      %532 = vmatmul.bf16.gmra.mxu0 %v440
      %v533 = vpop.f32.mrf.mxu0
      %v534 = vadd.f32 0.0, %v533
      %v535 = vpop.f32.mrf.mxu0
      %v536 = vadd.f32 0.0, %v535
      %537 = vmatmul.bf16.gmra.mxu0 %v441
      %v538 = vpop.f32.mrf.mxu0
      %v539 = vadd.f32 0.0, %v538
      %v540 = vpop.f32.mrf.mxu0
      %v541 = vadd.f32 0.0, %v540
      %542 = vmatmul.bf16.gmra.mxu0 %v442
      %v543 = vpop.f32.mrf.mxu0
      %v544 = vadd.f32 0.0, %v543
      %v545 = vpop.f32.mrf.mxu0
      %v546 = vadd.f32 0.0, %v545
      %547 = vmatmul.bf16.gmra.mxu0 %v443
      %v548 = vpop.f32.mrf.mxu0
      %v549 = vadd.f32 0.0, %v548
      %v550 = vpop.f32.mrf.mxu0
      %v551 = vadd.f32 0.0, %v550
      %552 = vmatmul.bf16.gmra.mxu0 %v444
      %v553 = vpop.f32.mrf.mxu0
      %v554 = vadd.f32 0.0, %v553
      %v555 = vpop.f32.mrf.mxu0
      %v556 = vadd.f32 0.0, %v555
      %557 = vmatmul.bf16.gmra.mxu0 %v445
      %v558 = vpop.f32.mrf.mxu0
      %v559 = vadd.f32 0.0, %v558
      %v560 = vpop.f32.mrf.mxu0
      %v561 = vadd.f32 0.0, %v560
      %562 = vmatmul.bf16.gmra.mxu0 %v446
      %v563 = vpop.f32.mrf.mxu0
      %v564 = vadd.f32 0.0, %v563
      %v565 = vpop.f32.mrf.mxu0
      %v566 = vadd.f32 0.0, %v565
      %567 = vmatmul.bf16.gmra.mxu0 %v447
      %v568 = vpop.f32.mrf.mxu0
      %v569 = vadd.f32 0.0, %v568
      %v570 = vpop.f32.mrf.mxu0
      %v571 = vadd.f32 0.0, %v570
      %572 = vmatmul.bf16.gmra.mxu0 %v448
      %v573 = vpop.f32.mrf.mxu0
      %v574 = vadd.f32 0.0, %v573
      %v575 = vpop.f32.mrf.mxu0
      %v576 = vadd.f32 0.0, %v575
      %577 = vmatmul.bf16.gmra.mxu0 %v449
      %v578 = vpop.f32.mrf.mxu0
      %v579 = vadd.f32 0.0, %v578
      %v580 = vpop.f32.mrf.mxu0
      %v581 = vadd.f32 0.0, %v580
      %582 = vmatmul.bf16.gmra.mxu0 %v450
      %v583 = vpop.f32.mrf.mxu0
      %v584 = vadd.f32 0.0, %v583
      %v585 = vpop.f32.mrf.mxu0
      %v586 = vadd.f32 0.0, %v585
      %587 = vmatmul.bf16.gmra.mxu0 %v451
      %v588 = vpop.f32.mrf.mxu0
      %v589 = vadd.f32 0.0, %v588
      %v590 = vpop.f32.mrf.mxu0
      %v591 = vadd.f32 0.0, %v590
      %592 = vmatmul.bf16.gmra.mxu0 %v452
      %v593 = vpop.f32.mrf.mxu0
      %v594 = vadd.f32 0.0, %v593
      %v595 = vpop.f32.mrf.mxu0
      %v596 = vadd.f32 0.0, %v595
      %597 = vmatmul.bf16.gmra.mxu0 %v453
      %v598 = vpop.f32.mrf.mxu0
      %v599 = vadd.f32 0.0, %v598
      %v600 = vpop.f32.mrf.mxu0
      %v601 = vadd.f32 0.0, %v600
      %602 = vmatmul.bf16.gmra.mxu0 %v454
      %v603 = vpop.f32.mrf.mxu0
      %v604 = vadd.f32 0.0, %v603
      %v605 = vpop.f32.mrf.mxu0
      %v606 = vadd.f32 0.0, %v605
      %607 = vdwg.mxu0
      %v608 = vadd.f32 %v295, %v529
      %v609 = vadd.f32 %v296, %v531
      %v610 = vadd.f32 %v297, %v534
      %v611 = vadd.f32 %v298, %v536
      %v612 = vadd.f32 %v299, %v539
      %v613 = vadd.f32 %v300, %v541
      %v614 = vadd.f32 %v301, %v544
      %v615 = vadd.f32 %v302, %v546
      %v616 = vadd.f32 %v303, %v549
      %v617 = vadd.f32 %v304, %v551
      %v618 = vadd.f32 %v305, %v554
      %v619 = vadd.f32 %v306, %v556
      %v620 = vadd.f32 %v307, %v559
      %v621 = vadd.f32 %v308, %v561
      %v622 = vadd.f32 %v309, %v564
      %v623 = vadd.f32 %v310, %v566
      %v624 = vadd.f32 %v311, %v569
      %v625 = vadd.f32 %v312, %v571
      %v626 = vadd.f32 %v313, %v574
      %v627 = vadd.f32 %v314, %v576
      %v628 = vadd.f32 %v315, %v579
      %v629 = vadd.f32 %v316, %v581
      %v630 = vadd.f32 %v317, %v584
      %v631 = vadd.f32 %v318, %v586
      %v632 = vadd.f32 %v319, %v589
      %v633 = vadd.f32 %v320, %v591
      %v634 = vadd.f32 %v321, %v594
      %v635 = vadd.f32 %v322, %v596
      %v636 = vadd.f32 %v323, %v599
      %v637 = vadd.f32 %v324, %v601
      %v638 = vadd.f32 %v325, %v604
      %v639 = vadd.f32 %v326, %v606
      %640 = vst [vmem:[#allocation2] sm:$0xff] %v608
      %641 = vst [vmem:[#allocation2 + $0x8] sm:$0xff] %v609
      %642 = vst [vmem:[#allocation2 + $0x10] sm:$0xff] %v610
      %643 = vst [vmem:[#allocation2 + $0x18] sm:$0xff] %v611
      %644 = vst [vmem:[#allocation2 + $0x20] sm:$0xff] %v612
      %645 = vst [vmem:[#allocation2 + $0x28] sm:$0xff] %v613
      %646 = vst [vmem:[#allocation2 + $0x30] sm:$0xff] %v614
      %647 = vst [vmem:[#allocation2 + $0x38] sm:$0xff] %v615
      %648 = vst [vmem:[#allocation2 + $0x40] sm:$0xff] %v616
      %649 = vst [vmem:[#allocation2 + $0x48] sm:$0xff] %v617
      %650 = vst [vmem:[#allocation2 + $0x50] sm:$0xff] %v618
      %651 = vst [vmem:[#allocation2 + $0x58] sm:$0xff] %v619
      %652 = vst [vmem:[#allocation2 + $0x60] sm:$0xff] %v620
      %653 = vst [vmem:[#allocation2 + $0x68] sm:$0xff] %v621
      %654 = vst [vmem:[#allocation2 + $0x70] sm:$0xff] %v622
      %655 = vst [vmem:[#allocation2 + $0x78] sm:$0xff] %v623
      %656 = vst [vmem:[#allocation2 + $0x80] sm:$0xff] %v624
      %657 = vst [vmem:[#allocation2 + $0x88] sm:$0xff] %v625
      %658 = vst [vmem:[#allocation2 + $0x90] sm:$0xff] %v626
      %659 = vst [vmem:[#allocation2 + $0x98] sm:$0xff] %v627
      %660 = vst [vmem:[#allocation2 + $0xa0] sm:$0xff] %v628
      %661 = vst [vmem:[#allocation2 + $0xa8] sm:$0xff] %v629
      %662 = vst [vmem:[#allocation2 + $0xb0] sm:$0xff] %v630
      %663 = vst [vmem:[#allocation2 + $0xb8] sm:$0xff] %v631
      %664 = vst [vmem:[#allocation2 + $0xc0] sm:$0xff] %v632
      %665 = vst [vmem:[#allocation2 + $0xc8] sm:$0xff] %v633
      %666 = vst [vmem:[#allocation2 + $0xd0] sm:$0xff] %v634
      %667 = vst [vmem:[#allocation2 + $0xd8] sm:$0xff] %v635
      %668 = vst [vmem:[#allocation2 + $0xe0] sm:$0xff] %v636
      %669 = vst [vmem:[#allocation2 + $0xe8] sm:$0xff] %v637
      %670 = vst [vmem:[#allocation2 + $0xf0] sm:$0xff] %v638
      %671 = vst [vmem:[#allocation2 + $0xf8] sm:$0xff] %v639
      // Predicated region
      $region37: #{_lambda_.3} parent=31 // pred_check
        %p672 = pneg %p259
      $region38: #{_lambda_.3} parent=31 // pred_check_branch
        %674 = sbr.rel (%p672) target = $region40
      $region39: #{_lambda_.3} parent=31 // pred_region
        %v675 = vld [vmem:[#allocation2] sm:$0xff]
        %v676 = vld [vmem:[#allocation2 + $0x8] sm:$0xff]
        %v677 = vld [vmem:[#allocation2 + $0x10] sm:$0xff]
        %v678 = vld [vmem:[#allocation2 + $0x18] sm:$0xff]
        %v679 = vld [vmem:[#allocation2 + $0x20] sm:$0xff]
        %v680 = vld [vmem:[#allocation2 + $0x28] sm:$0xff]
        %v681 = vld [vmem:[#allocation2 + $0x30] sm:$0xff]
        %v682 = vld [vmem:[#allocation2 + $0x38] sm:$0xff]
        %v683 = vld [vmem:[#allocation2 + $0x40] sm:$0xff]
        %v684 = vld [vmem:[#allocation2 + $0x48] sm:$0xff]
        %v685 = vld [vmem:[#allocation2 + $0x50] sm:$0xff]
        %v686 = vld [vmem:[#allocation2 + $0x58] sm:$0xff]
        %v687 = vld [vmem:[#allocation2 + $0x60] sm:$0xff]
        %v688 = vld [vmem:[#allocation2 + $0x68] sm:$0xff]
        %v689 = vld [vmem:[#allocation2 + $0x70] sm:$0xff]
        %v690 = vld [vmem:[#allocation2 + $0x78] sm:$0xff]
        %v691 = vld [vmem:[#allocation2 + $0x80] sm:$0xff]
        %v692 = vld [vmem:[#allocation2 + $0x88] sm:$0xff]
        %v693 = vld [vmem:[#allocation2 + $0x90] sm:$0xff]
        %v694 = vld [vmem:[#allocation2 + $0x98] sm:$0xff]
        %v695 = vld [vmem:[#allocation2 + $0xa0] sm:$0xff]
        %v696 = vld [vmem:[#allocation2 + $0xa8] sm:$0xff]
        %v697 = vld [vmem:[#allocation2 + $0xb0] sm:$0xff]
        %v698 = vld [vmem:[#allocation2 + $0xb8] sm:$0xff]
        %v699 = vld [vmem:[#allocation2 + $0xc0] sm:$0xff]
        %v700 = vld [vmem:[#allocation2 + $0xc8] sm:$0xff]
        %v701 = vld [vmem:[#allocation2 + $0xd0] sm:$0xff]
        %v702 = vld [vmem:[#allocation2 + $0xd8] sm:$0xff]
        %v703 = vld [vmem:[#allocation2 + $0xe0] sm:$0xff]
        %v704 = vld [vmem:[#allocation2 + $0xe8] sm:$0xff]
        %v705 = vld [vmem:[#allocation2 + $0xf0] sm:$0xff]
        %v706 = vld [vmem:[#allocation2 + $0xf8] sm:$0xff]
        %v707 = vld [vmem:[%s249] sm:$0x1]
        %v709 = vperm.slane %v707, 0
        %v711 = vadd.f32 %v675, %v709
        %v712 = vadd.f32 %v676, %v709
        %v713 = vadd.f32 %v677, %v709
        %v714 = vadd.f32 %v678, %v709
        %v715 = vadd.f32 %v679, %v709
        %v716 = vadd.f32 %v680, %v709
        %v717 = vadd.f32 %v681, %v709
        %v718 = vadd.f32 %v682, %v709
        %v719 = vadd.f32 %v683, %v709
        %v720 = vadd.f32 %v684, %v709
        %v721 = vadd.f32 %v685, %v709
        %v722 = vadd.f32 %v686, %v709
        %v723 = vadd.f32 %v687, %v709
        %v724 = vadd.f32 %v688, %v709
        %v725 = vadd.f32 %v689, %v709
        %v726 = vadd.f32 %v690, %v709
        %v727 = vadd.f32 %v691, %v709
        %v728 = vadd.f32 %v692, %v709
        %v729 = vadd.f32 %v693, %v709
        %v730 = vadd.f32 %v694, %v709
        %v731 = vadd.f32 %v695, %v709
        %v732 = vadd.f32 %v696, %v709
        %v733 = vadd.f32 %v697, %v709
        %v734 = vadd.f32 %v698, %v709
        %v735 = vadd.f32 %v699, %v709
        %v736 = vadd.f32 %v700, %v709
        %v737 = vadd.f32 %v701, %v709
        %v738 = vadd.f32 %v702, %v709
        %v739 = vadd.f32 %v703, %v709
        %v740 = vadd.f32 %v704, %v709
        %v741 = vadd.f32 %v705, %v709
        %v742 = vadd.f32 %v706, %v709
        %v743 = vmax.f32 %v711, 0.0
        %v744 = vmax.f32 %v712, 0.0
        %v745 = vmax.f32 %v713, 0.0
        %v746 = vmax.f32 %v714, 0.0
        %v747 = vmax.f32 %v715, 0.0
        %v748 = vmax.f32 %v716, 0.0
        %v749 = vmax.f32 %v717, 0.0
        %v750 = vmax.f32 %v718, 0.0
        %v751 = vmax.f32 %v719, 0.0
        %v752 = vmax.f32 %v720, 0.0
        %v753 = vmax.f32 %v721, 0.0
        %v754 = vmax.f32 %v722, 0.0
        %v755 = vmax.f32 %v723, 0.0
        %v756 = vmax.f32 %v724, 0.0
        %v757 = vmax.f32 %v725, 0.0
        %v758 = vmax.f32 %v726, 0.0
        %v759 = vmax.f32 %v727, 0.0
        %v760 = vmax.f32 %v728, 0.0
        %v761 = vmax.f32 %v729, 0.0
        %v762 = vmax.f32 %v730, 0.0
        %v763 = vmax.f32 %v731, 0.0
        %v764 = vmax.f32 %v732, 0.0
        %v765 = vmax.f32 %v733, 0.0
        %v766 = vmax.f32 %v734, 0.0
        %v767 = vmax.f32 %v735, 0.0
        %v768 = vmax.f32 %v736, 0.0
        %v769 = vmax.f32 %v737, 0.0
        %v770 = vmax.f32 %v738, 0.0
        %v771 = vmax.f32 %v739, 0.0
        %v772 = vmax.f32 %v740, 0.0
        %v773 = vmax.f32 %v741, 0.0
        %v774 = vmax.f32 %v742, 0.0
        %v775 = vpack.c.bf16 %v743, %v743
        %v776 = vpack.c.bf16 %v744, %v744
        %v777 = vpack.c.bf16 %v745, %v745
        %v778 = vpack.c.bf16 %v746, %v746
        %v779 = vpack.c.bf16 %v747, %v747
        %v780 = vpack.c.bf16 %v748, %v748
        %v781 = vpack.c.bf16 %v749, %v749
        %v782 = vpack.c.bf16 %v750, %v750
        %v783 = vpack.c.bf16 %v751, %v751
        %v784 = vpack.c.bf16 %v752, %v752
        %v785 = vpack.c.bf16 %v753, %v753
        %v786 = vpack.c.bf16 %v754, %v754
        %v787 = vpack.c.bf16 %v755, %v755
        %v788 = vpack.c.bf16 %v756, %v756
        %v789 = vpack.c.bf16 %v757, %v757
        %v790 = vpack.c.bf16 %v758, %v758
        %v791 = vpack.c.bf16 %v759, %v759
        %v792 = vpack.c.bf16 %v760, %v760
        %v793 = vpack.c.bf16 %v761, %v761
        %v794 = vpack.c.bf16 %v762, %v762
        %v795 = vpack.c.bf16 %v763, %v763
        %v796 = vpack.c.bf16 %v764, %v764
        %v797 = vpack.c.bf16 %v765, %v765
        %v798 = vpack.c.bf16 %v766, %v766
        %v799 = vpack.c.bf16 %v767, %v767
        %v800 = vpack.c.bf16 %v768, %v768
        %v801 = vpack.c.bf16 %v769, %v769
        %v802 = vpack.c.bf16 %v770, %v770
        %v803 = vpack.c.bf16 %v771, %v771
        %v804 = vpack.c.bf16 %v772, %v772
        %v805 = vpack.c.bf16 %v773, %v773
        %v806 = vpack.c.bf16 %v774, %v774
        %807 = vst [vmem:[%s257] sm:$0xf] %v775
        %808 = vst [vmem:[%s257 + $0x4] sm:$0xf] %v776
        %809 = vst [vmem:[%s257 + $0x8] sm:$0xf] %v777
        %810 = vst [vmem:[%s257 + $0xc] sm:$0xf] %v778
        %811 = vst [vmem:[%s257 + $0x10] sm:$0xf] %v779
        %812 = vst [vmem:[%s257 + $0x14] sm:$0xf] %v780
        %813 = vst [vmem:[%s257 + $0x18] sm:$0xf] %v781
        %814 = vst [vmem:[%s257 + $0x1c] sm:$0xf] %v782
        %815 = vst [vmem:[%s257 + $0x20] sm:$0xf] %v783
        %816 = vst [vmem:[%s257 + $0x24] sm:$0xf] %v784
        %817 = vst [vmem:[%s257 + $0x28] sm:$0xf] %v785
        %818 = vst [vmem:[%s257 + $0x2c] sm:$0xf] %v786
        %819 = vst [vmem:[%s257 + $0x30] sm:$0xf] %v787
        %820 = vst [vmem:[%s257 + $0x34] sm:$0xf] %v788
        %821 = vst [vmem:[%s257 + $0x38] sm:$0xf] %v789
        %822 = vst [vmem:[%s257 + $0x3c] sm:$0xf] %v790
        %823 = vst [vmem:[%s257 + $0x40] sm:$0xf] %v791
        %824 = vst [vmem:[%s257 + $0x44] sm:$0xf] %v792
        %825 = vst [vmem:[%s257 + $0x48] sm:$0xf] %v793
        %826 = vst [vmem:[%s257 + $0x4c] sm:$0xf] %v794
        %827 = vst [vmem:[%s257 + $0x50] sm:$0xf] %v795
        %828 = vst [vmem:[%s257 + $0x54] sm:$0xf] %v796
        %829 = vst [vmem:[%s257 + $0x58] sm:$0xf] %v797
        %830 = vst [vmem:[%s257 + $0x5c] sm:$0xf] %v798
        %831 = vst [vmem:[%s257 + $0x60] sm:$0xf] %v799
        %832 = vst [vmem:[%s257 + $0x64] sm:$0xf] %v800
        %833 = vst [vmem:[%s257 + $0x68] sm:$0xf] %v801
        %834 = vst [vmem:[%s257 + $0x6c] sm:$0xf] %v802
        %835 = vst [vmem:[%s257 + $0x70] sm:$0xf] %v803
        %836 = vst [vmem:[%s257 + $0x74] sm:$0xf] %v804
        %837 = vst [vmem:[%s257 + $0x78] sm:$0xf] %v805
        %838 = vst [vmem:[%s257 + $0x7c] sm:$0xf] %v806
      $region40: #{_lambda_.3} parent=31 // pred_fallthru
        _
      %s839 = smul.u32 32, %s19
      %p840 = scmp.lt.s32.totalorder %s839, 63
      %s841 = scalar_select %p840, %s839, 63
      %p842 = scmp.lt.s32.totalorder %s20, 0
      %s843 = scalar_select %p842, %s20, 0
      %s844 = sadd.s32 %s843, %s841
      %s845 = smul.addr %s844, 4
      %s846 = scalar_lea.vmem %s3, %s845
      // Predicated region
      $region41: #{_lambda_.3} parent=31 // pred_check
        %p847 = pneg %p135
      $region42: #{_lambda_.3} parent=31 // pred_check_branch
        %849 = sbr.rel (%p847) target = $region44
      $region43: #{_lambda_.3} parent=31 // pred_region
        %s850 = smul.u32 32, %s19
      $region44: #{_lambda_.3} parent=31 // pred_fallthru
        _
    $region32: #{_lambda_.3} parent=5 // pred_fallthru
      _
    %p851 = scmp.le.s32.totalorder 2, %s9
    // Predicated region
    $region45: #{_lambda_.3} parent=5 // pred_check
      %p852 = pneg %p851
    $region46: #{_lambda_.3} parent=5 // pred_check_branch
      %854 = sbr.rel (%p852) target = $region48
    $region47: #{_lambda_.3} parent=5 // pred_region
      %s855 = ssub.s32 %s9, 2
      // Predicated region
      $region49: #{_lambda_.3} parent=47 // pred_check
        %p856 = pneg %p141
      $region50: #{_lambda_.3} parent=47 // pred_check_branch
        %858 = sbr.rel (%p856) target = $region52
      $region51: #{_lambda_.3} parent=47 // pred_region
        %s859 = smul.u32 32, %s22
        %p860 = scmp.lt.s32.totalorder %s859, 63
        %s861 = scalar_select %p860, %s859, 63
        %p862 = scmp.lt.s32.totalorder %s23, 0
        %s863 = scalar_select %p862, %s23, 0
        %s864 = sadd.s32 %s863, %s861
        %s865 = smul.addr %s864, 4
        %s866 = scalar_lea.vmem %s3, %s865
      $region52: #{_lambda_.3} parent=47 // pred_fallthru
        _
    $region48: #{_lambda_.3} parent=5 // pred_fallthru
      _
  $region6: #{_lambda_.3} parent=0 // loop_footer
    %s13 = sadd.s32 1, %s9
  $region7: #{_lambda_.3} parent=0 // loop_footer_branch
    %8 = sbr.rel target = $region3
  $region8: #{_lambda_.3} parent=0 // loop_exit
    _

// kernel: _lambda_.4
$region0: #{_lambda_.4}
  #allocation0 [shape = 'u32[]', space=smem, size = 0x4, offset = 0x4, fixed_abs, tag = 'smem constant byte address 0x4 - core index']
  #allocation1 [shape = 'u32[72,128]{1,0:T(1,128)}', space=vmem, size = 0x9000, scoped, tag = 'internal scratch']
  #allocation2 [shape = 'f32[256,128]{1,0:T(8,128)}', space=vmem, size = 0x20000, scoped, tag = 'scratch operand']
  %s0 = inlined_call_operand.vmem [shape: bf16[512,128], index: 0, kind: input, shape index: {}]
  %s1 = inlined_call_operand.vmem [shape: bf16[128,128], index: 1, kind: input, shape index: {}]
  %s2 = inlined_call_operand.vmem [shape: f32[1,128], index: 2, kind: input, shape index: {}]
  %s3 = inlined_call_operand.vmem [shape: bf16[512,128], index: 3, kind: input, shape index: {}]
  %s4 = inlined_call_operand.vmem [shape: bf16[512,128], index: 4, kind: output, shape index: {}]
  %s5 = sld [smem:[#allocation0]]
  $region57: #{_lambda_.4} parent=0
    _
  %s7 = ssub.s32 1, %s5
  %s8 = scalar_select 0, %s7, %s5
  loop: start=0, step=1, limit=4
  $region2: #{_lambda_.4} parent=0 // loop_pre_header
    _
  $region3: #{_lambda_.4} parent=0 // loop_header
    %s10 = sphi 0, %s14
    %p11 = scmp.ge.s32.totalorder %s10, 4
    %s17 = sphi 0, %s36
    %s18 = sphi 0, %s32
    %s19 = sphi 0, %s28
    %s20 = sphi 0, %s17
    %s21 = sphi 0, %s18
    %s22 = sphi 0, %s19
    %s23 = sphi 0, %s20
    %s24 = sphi 0, %s21
    %s25 = sphi 0, %s22
    %s41 = sphi 0, %s43
    %s44 = sphi 0, %s41
    %s45 = sphi 0, %s44
    %s61 = sphi 0, %s45
    %s69 = sphi 0, %s71
    %s72 = sphi 0, %s69
    %s73 = sphi 0, %s72
    %s89 = sphi 0, %s73
    %s95 = sphi 0, %s97
    %s98 = sphi 0, %s95
    %s99 = sphi 0, %s98
    %s115 = sphi 0, %s99
    %s123 = sphi 0, %s125
    %s126 = sphi 0, %s123
    %s127 = sphi 0, %s126
    %s143 = sphi 0, %s127
    %s151 = sphi 0, %s153
    %s154 = sphi 0, %s151
    %s155 = sphi 0, %s154
    %s171 = sphi 0, %s155
  $region4: #{_lambda_.4} parent=0 // loop_header_branch
    %13 = sbr.rel (%p11) target = $region8
  $region5: #{_lambda_.4} parent=0 // loop_body
    %s15 = ssub.s32 %s10, 1
    %s16 = ssub.s32 %s10, 2
    %s26 = sadd.s32 1, %s19
    %p27 = scmp.ge.s32.totalorder %s26, 1
    %s28 = scalar_select %p27, 0, %s26
    %s29 = sadd.s32 1, %s18
    %s30 = scalar_select %p27, %s29, %s18
    %p31 = scmp.ge.s32.totalorder %s30, 1
    %s32 = scalar_select %p31, 0, %s30
    %s33 = sadd.s32 1, %s17
    %s34 = scalar_select %p31, %s33, %s17
    %p35 = scmp.ge.s32.totalorder %s34, 2
    %s36 = scalar_select %p35, 0, %s34
    %s37 = ssub.s32 %s17, %s36
    %s38 = ssub.s32 %s19, %s28
    %s39 = sor.u32 %s37, %s38
    %p40 = scmp.eq.s32.totalorder %s39, 0
    %s42 = sadd.s32 %s41, 1
    %s43 = scalar_select %p40, %s41, %s42
    %p46 = pneg %p40
    %p47 = scmp.eq.s32.totalorder %s10, 1
    %p48 = por %p46, %p47
    %p49 = scmp.ne.s32.totalorder %s41, %s44
    %p50 = scmp.eq.s32.totalorder %s10, 0
    %p51 = por %p49, %p50
    %p52 = scmp.ne.s32.totalorder %s41, %s44
    %p53 = scmp.eq.s32.totalorder %s15, 1
    %p54 = por %p52, %p53
    %p55 = scmp.ne.s32.totalorder %s44, %s45
    %p56 = scmp.eq.s32.totalorder %s15, 0
    %p57 = por %p55, %p56
    %p58 = scmp.ne.s32.totalorder %s44, %s45
    %p59 = scmp.eq.s32.totalorder %s16, 1
    %p60 = por %p58, %p59
    %p62 = scmp.ne.s32.totalorder %s45, %s61
    %p63 = scmp.eq.s32.totalorder %s16, 0
    %p64 = por %p62, %p63
    %s65 = ssub.s32 %s19, %s28
    %s66 = ssub.s32 %s18, %s32
    %s67 = sor.u32 %s65, %s66
    %p68 = scmp.eq.s32.totalorder %s67, 0
    %s70 = sadd.s32 %s69, 1
    %s71 = scalar_select %p68, %s69, %s70
    %p74 = pneg %p68
    %p75 = scmp.eq.s32.totalorder %s10, 1
    %p76 = por %p74, %p75
    %p77 = scmp.ne.s32.totalorder %s69, %s72
    %p78 = scmp.eq.s32.totalorder %s10, 0
    %p79 = por %p77, %p78
    %p80 = scmp.ne.s32.totalorder %s69, %s72
    %p81 = scmp.eq.s32.totalorder %s15, 1
    %p82 = por %p80, %p81
    %p83 = scmp.ne.s32.totalorder %s72, %s73
    %p84 = scmp.eq.s32.totalorder %s15, 0
    %p85 = por %p83, %p84
    %p86 = scmp.ne.s32.totalorder %s72, %s73
    %p87 = scmp.eq.s32.totalorder %s16, 1
    %p88 = por %p86, %p87
    %p90 = scmp.ne.s32.totalorder %s73, %s89
    %p91 = scmp.eq.s32.totalorder %s16, 0
    %p92 = por %p90, %p91
    %s93 = ssub.s32 %s18, %s32
    %p94 = scmp.eq.s32.totalorder %s93, 0
    %s96 = sadd.s32 %s95, 1
    %s97 = scalar_select %p94, %s95, %s96
    %p100 = pneg %p94
    %p101 = scmp.eq.s32.totalorder %s10, 1
    %p102 = por %p100, %p101
    %p103 = scmp.ne.s32.totalorder %s95, %s98
    %p104 = scmp.eq.s32.totalorder %s10, 0
    %p105 = por %p103, %p104
    %p106 = scmp.ne.s32.totalorder %s95, %s98
    %p107 = scmp.eq.s32.totalorder %s15, 1
    %p108 = por %p106, %p107
    %p109 = scmp.ne.s32.totalorder %s98, %s99
    %p110 = scmp.eq.s32.totalorder %s15, 0
    %p111 = por %p109, %p110
    %p112 = scmp.ne.s32.totalorder %s98, %s99
    %p113 = scmp.eq.s32.totalorder %s16, 1
    %p114 = por %p112, %p113
    %p116 = scmp.ne.s32.totalorder %s99, %s115
    %p117 = scmp.eq.s32.totalorder %s16, 0
    %p118 = por %p116, %p117
    %s119 = ssub.s32 %s17, %s36
    %s120 = ssub.s32 %s18, %s32
    %s121 = sor.u32 %s119, %s120
    %p122 = scmp.eq.s32.totalorder %s121, 0
    %s124 = sadd.s32 %s123, 1
    %s125 = scalar_select %p122, %s123, %s124
    %p128 = pneg %p122
    %p129 = scmp.eq.s32.totalorder %s10, 1
    %p130 = por %p128, %p129
    %p131 = scmp.ne.s32.totalorder %s123, %s126
    %p132 = scmp.eq.s32.totalorder %s10, 0
    %p133 = por %p131, %p132
    %p134 = scmp.ne.s32.totalorder %s123, %s126
    %p135 = scmp.eq.s32.totalorder %s15, 1
    %p136 = por %p134, %p135
    %p137 = scmp.ne.s32.totalorder %s126, %s127
    %p138 = scmp.eq.s32.totalorder %s15, 0
    %p139 = por %p137, %p138
    %p140 = scmp.ne.s32.totalorder %s126, %s127
    %p141 = scmp.eq.s32.totalorder %s16, 1
    %p142 = por %p140, %p141
    %p144 = scmp.ne.s32.totalorder %s127, %s143
    %p145 = scmp.eq.s32.totalorder %s16, 0
    %p146 = por %p144, %p145
    %s147 = ssub.s32 %s17, %s36
    %s148 = ssub.s32 %s18, %s32
    %s149 = sor.u32 %s147, %s148
    %p150 = scmp.eq.s32.totalorder %s149, 0
    %s152 = sadd.s32 %s151, 1
    %s153 = scalar_select %p150, %s151, %s152
    %p156 = pneg %p150
    %p157 = scmp.eq.s32.totalorder %s10, 1
    %p158 = por %p156, %p157
    %p159 = scmp.ne.s32.totalorder %s151, %s154
    %p160 = scmp.eq.s32.totalorder %s10, 0
    %p161 = por %p159, %p160
    %p162 = scmp.ne.s32.totalorder %s151, %s154
    %p163 = scmp.eq.s32.totalorder %s15, 1
    %p164 = por %p162, %p163
    %p165 = scmp.ne.s32.totalorder %s154, %s155
    %p166 = scmp.eq.s32.totalorder %s15, 0
    %p167 = por %p165, %p166
    %p168 = scmp.ne.s32.totalorder %s154, %s155
    %p169 = scmp.eq.s32.totalorder %s16, 1
    %p170 = por %p168, %p169
    %p172 = scmp.ne.s32.totalorder %s155, %s171
    %p173 = scmp.eq.s32.totalorder %s16, 0
    %p174 = por %p172, %p173
    %p175 = scmp.le.s32.totalorder 1, %s10
    %p176 = scmp.lt.s32.totalorder %s10, 3
    %p177 = pnand %p175, %p176
    %p178 = pneg %p177
    // Predicated region
    $region9: #{_lambda_.4} parent=5 // pred_check
      _
    $region10: #{_lambda_.4} parent=5 // pred_check_branch
      %180 = sbr.rel (%p177) target = $region12
    $region11: #{_lambda_.4} parent=5 // pred_region
      %s181 = ssub.s32 %s10, 1
      // Predicated region
      $region13: #{_lambda_.4} parent=11 // pred_check
        %p182 = pneg %p85
      $region14: #{_lambda_.4} parent=11 // pred_check_branch
        %184 = sbr.rel (%p182) target = $region16
      $region15: #{_lambda_.4} parent=11 // pred_region
        %s185 = smul.u32 16, %s22
        %p186 = scmp.lt.s32.totalorder %s185, 15
        %s187 = scalar_select %p186, %s185, 15
        %p188 = scmp.lt.s32.totalorder %s21, 0
        %s189 = scalar_select %p188, %s21, 0
        %s190 = sadd.s32 %s189, %s187
        %s191 = smul.addr %s190, 4
        %s192 = scalar_lea.vmem %s1, %s191
        %s193 = smul.u32 16, %s22
      $region16: #{_lambda_.4} parent=11 // pred_fallthru
        _
      // Predicated region
      $region17: #{_lambda_.4} parent=11 // pred_check
        %p194 = pneg %p111
      $region18: #{_lambda_.4} parent=11 // pred_check_branch
        %196 = sbr.rel (%p194) target = $region20
      $region19: #{_lambda_.4} parent=11 // pred_region
        %p197 = scmp.lt.s32.totalorder %s21, 0
        %s198 = scalar_select %p197, %s21, 0
        %s199 = scalar_lea.vmem %s2, %s198
      $region20: #{_lambda_.4} parent=11 // pred_fallthru
        _
    $region12: #{_lambda_.4} parent=5 // pred_fallthru
      _
    %p200 = scmp.lt.s32.totalorder %s10, 2
    // Predicated region
    $region21: #{_lambda_.4} parent=5 // pred_check
      %p201 = pneg %p200
    $region22: #{_lambda_.4} parent=5 // pred_check_branch
      %203 = sbr.rel (%p201) target = $region24
    $region23: #{_lambda_.4} parent=5 // pred_region
      // Predicated region
      $region25: #{_lambda_.4} parent=23 // pred_check
        %p204 = pneg %p51
      $region26: #{_lambda_.4} parent=23 // pred_check_branch
        %206 = sbr.rel (%p204) target = $region28
      $region27: #{_lambda_.4} parent=23 // pred_region
        %s207 = smul.u32 32, %s17
        %p208 = scmp.lt.s32.totalorder %s207, 63
        %s209 = scalar_select %p208, %s207, 63
        %p210 = scmp.lt.s32.totalorder %s19, 0
        %s211 = scalar_select %p210, %s19, 0
        %s212 = sadd.s32 %s211, %s209
        %s213 = smul.addr %s212, 4
        %s214 = scalar_lea.vmem %s0, %s213
        %s215 = smul.u32 32, %s17
      $region28: #{_lambda_.4} parent=23 // pred_fallthru
        _
      // Predicated region
      $region29: #{_lambda_.4} parent=23 // pred_check
        %p216 = pneg %p133
      $region30: #{_lambda_.4} parent=23 // pred_check_branch
        %218 = sbr.rel (%p216) target = $region32
      $region31: #{_lambda_.4} parent=23 // pred_region
        %s219 = smul.u32 32, %s17
        %p220 = scmp.lt.s32.totalorder %s219, 63
        %s221 = scalar_select %p220, %s219, 63
        %p222 = scmp.lt.s32.totalorder %s18, 0
        %s223 = scalar_select %p222, %s18, 0
        %s224 = sadd.s32 %s223, %s221
        %s225 = smul.addr %s224, 4
        %s226 = scalar_lea.vmem %s3, %s225
        %s227 = smul.u32 32, %s17
      $region32: #{_lambda_.4} parent=23 // pred_fallthru
        _
    $region24: #{_lambda_.4} parent=5 // pred_fallthru
      _
    %p228 = scmp.le.s32.totalorder 1, %s10
    %p229 = scmp.lt.s32.totalorder %s10, 3
    %p230 = pnand %p228, %p229
    %p231 = pneg %p230
    // Predicated region
    $region33: #{_lambda_.4} parent=5 // pred_check
      _
    $region34: #{_lambda_.4} parent=5 // pred_check_branch
      %233 = sbr.rel (%p230) target = $region36
    $region35: #{_lambda_.4} parent=5 // pred_region
      %s234 = ssub.s32 %s10, 1
      %s235 = smul.u32 32, %s20
      %p236 = scmp.lt.s32.totalorder %s235, 63
      %s237 = scalar_select %p236, %s235, 63
      %p238 = scmp.lt.s32.totalorder %s22, 0
      %s239 = scalar_select %p238, %s22, 0
      %s240 = sadd.s32 %s239, %s237
      %s241 = smul.addr %s240, 4
      %s242 = scalar_lea.vmem %s0, %s241
      %p243 = pneg %p57
      %p244 = pneg %p54
      %s245 = smul.u32 16, %s22
      %p246 = scmp.lt.s32.totalorder %s245, 15
      %s247 = scalar_select %p246, %s245, 15
      %p248 = scmp.lt.s32.totalorder %s21, 0
      %s249 = scalar_select %p248, %s21, 0
      %s250 = sadd.s32 %s249, %s247
      %s251 = smul.addr %s250, 4
      %s252 = scalar_lea.vmem %s1, %s251
      %p253 = pneg %p85
      %p254 = pneg %p82
      %p255 = scmp.lt.s32.totalorder %s21, 0
      %s256 = scalar_select %p255, %s21, 0
      %s257 = scalar_lea.vmem %s2, %s256
      %p258 = pneg %p111
      %p259 = pneg %p108
      %s260 = smul.u32 32, %s20
      %p261 = scmp.lt.s32.totalorder %s260, 63
      %s262 = scalar_select %p261, %s260, 63
      %p263 = scmp.lt.s32.totalorder %s21, 0
      %s264 = scalar_select %p263, %s21, 0
      %s265 = sadd.s32 %s264, %s262
      %s266 = smul.addr %s265, 4
      %s267 = scalar_lea.vmem %s3, %s266
      %p268 = pneg %p139
      %p269 = pneg %p136
      %p270 = pneg %p167
      %p271 = pneg %p164
      %s272 = smul.u32 32, %s20
      %p273 = scmp.lt.s32.totalorder %s272, 63
      %s274 = scalar_select %p273, %s272, 63
      %p275 = scmp.lt.s32.totalorder %s21, 0
      %s276 = scalar_select %p275, %s21, 0
      %s277 = sadd.s32 %s276, %s274
      %s278 = smul.addr %s277, 4
      %s279 = scalar_lea.vmem %s4, %s278
      %s280 = smul.u32 32, %s20
      %p281 = scmp.lt.s32.totalorder %s280, 63
      %s282 = scalar_select %p281, %s280, 63
      %p283 = scmp.lt.s32.totalorder %s22, 0
      %s284 = scalar_select %p283, %s22, 0
      %s285 = sadd.s32 %s284, %s282
      %s286 = smul.addr %s285, 4
      %s287 = scalar_lea.vmem %s0, %s286
      %s288 = smul.u32 32, %s20
      %s289 = smul.u32 16, %s22
      %p290 = scmp.lt.s32.totalorder %s289, 15
      %s291 = scalar_select %p290, %s289, 15
      %p292 = scmp.lt.s32.totalorder %s21, 0
      %s293 = scalar_select %p292, %s21, 0
      %s294 = sadd.s32 %s293, %s291
      %s295 = smul.addr %s294, 4
      %s296 = scalar_lea.vmem %s1, %s295
      %s297 = smul.u32 16, %s22
      %p298 = scmp.lt.s32.totalorder %s21, 0
      %s299 = scalar_select %p298, %s21, 0
      %s300 = scalar_lea.vmem %s2, %s299
      %s301 = smul.u32 32, %s20
      %p302 = scmp.lt.s32.totalorder %s301, 63
      %s303 = scalar_select %p302, %s301, 63
      %p304 = scmp.lt.s32.totalorder %s21, 0
      %s305 = scalar_select %p304, %s21, 0
      %s306 = sadd.s32 %s305, %s303
      %s307 = smul.addr %s306, 4
      %s308 = scalar_lea.vmem %s3, %s307
      %s309 = smul.u32 32, %s20
      %s310 = smul.u32 32, %s20
      %p311 = scmp.lt.s32.totalorder %s310, 63
      %s312 = scalar_select %p311, %s310, 63
      %p313 = scmp.lt.s32.totalorder %s21, 0
      %s314 = scalar_select %p313, %s21, 0
      %s315 = sadd.s32 %s314, %s312
      %s316 = smul.addr %s315, 4
      %s317 = scalar_lea.vmem %s4, %s316
      %s318 = smul.u32 32, %s20
      %p319 = scmp.eq.s32.totalorder %s22, 0
      // Predicated region
      $region37: #{_lambda_.4} parent=35 // pred_check
        %p320 = pneg %p319
      $region38: #{_lambda_.4} parent=35 // pred_check_branch
        %322 = sbr.rel (%p320) target = $region40
      $region39: #{_lambda_.4} parent=35 // pred_region
        %323 = vst [vmem:[#allocation2] sm:$0xff] 0.0
        %324 = vst [vmem:[#allocation2 + $0x8] sm:$0xff] 0.0
        %325 = vst [vmem:[#allocation2 + $0x10] sm:$0xff] 0.0
        %326 = vst [vmem:[#allocation2 + $0x18] sm:$0xff] 0.0
        %327 = vst [vmem:[#allocation2 + $0x20] sm:$0xff] 0.0
        %328 = vst [vmem:[#allocation2 + $0x28] sm:$0xff] 0.0
        %329 = vst [vmem:[#allocation2 + $0x30] sm:$0xff] 0.0
        %330 = vst [vmem:[#allocation2 + $0x38] sm:$0xff] 0.0
        %331 = vst [vmem:[#allocation2 + $0x40] sm:$0xff] 0.0
        %332 = vst [vmem:[#allocation2 + $0x48] sm:$0xff] 0.0
        %333 = vst [vmem:[#allocation2 + $0x50] sm:$0xff] 0.0
        %334 = vst [vmem:[#allocation2 + $0x58] sm:$0xff] 0.0
        %335 = vst [vmem:[#allocation2 + $0x60] sm:$0xff] 0.0
        %336 = vst [vmem:[#allocation2 + $0x68] sm:$0xff] 0.0
        %337 = vst [vmem:[#allocation2 + $0x70] sm:$0xff] 0.0
        %338 = vst [vmem:[#allocation2 + $0x78] sm:$0xff] 0.0
        %339 = vst [vmem:[#allocation2 + $0x80] sm:$0xff] 0.0
        %340 = vst [vmem:[#allocation2 + $0x88] sm:$0xff] 0.0
        %341 = vst [vmem:[#allocation2 + $0x90] sm:$0xff] 0.0
        %342 = vst [vmem:[#allocation2 + $0x98] sm:$0xff] 0.0
        %343 = vst [vmem:[#allocation2 + $0xa0] sm:$0xff] 0.0
        %344 = vst [vmem:[#allocation2 + $0xa8] sm:$0xff] 0.0
        %345 = vst [vmem:[#allocation2 + $0xb0] sm:$0xff] 0.0
        %346 = vst [vmem:[#allocation2 + $0xb8] sm:$0xff] 0.0
        %347 = vst [vmem:[#allocation2 + $0xc0] sm:$0xff] 0.0
        %348 = vst [vmem:[#allocation2 + $0xc8] sm:$0xff] 0.0
        %349 = vst [vmem:[#allocation2 + $0xd0] sm:$0xff] 0.0
        %350 = vst [vmem:[#allocation2 + $0xd8] sm:$0xff] 0.0
        %351 = vst [vmem:[#allocation2 + $0xe0] sm:$0xff] 0.0
        %352 = vst [vmem:[#allocation2 + $0xe8] sm:$0xff] 0.0
        %353 = vst [vmem:[#allocation2 + $0xf0] sm:$0xff] 0.0
        %354 = vst [vmem:[#allocation2 + $0xf8] sm:$0xff] 0.0
      $region40: #{_lambda_.4} parent=35 // pred_fallthru
        _
      %v355 = vld [vmem:[#allocation2] sm:$0xff]
      %v356 = vld [vmem:[#allocation2 + $0x8] sm:$0xff]
      %v357 = vld [vmem:[#allocation2 + $0x10] sm:$0xff]
      %v358 = vld [vmem:[#allocation2 + $0x18] sm:$0xff]
      %v359 = vld [vmem:[#allocation2 + $0x20] sm:$0xff]
      %v360 = vld [vmem:[#allocation2 + $0x28] sm:$0xff]
      %v361 = vld [vmem:[#allocation2 + $0x30] sm:$0xff]
      %v362 = vld [vmem:[#allocation2 + $0x38] sm:$0xff]
      %v363 = vld [vmem:[#allocation2 + $0x40] sm:$0xff]
      %v364 = vld [vmem:[#allocation2 + $0x48] sm:$0xff]
      %v365 = vld [vmem:[#allocation2 + $0x50] sm:$0xff]
      %v366 = vld [vmem:[#allocation2 + $0x58] sm:$0xff]
      %v367 = vld [vmem:[#allocation2 + $0x60] sm:$0xff]
      %v368 = vld [vmem:[#allocation2 + $0x68] sm:$0xff]
      %v369 = vld [vmem:[#allocation2 + $0x70] sm:$0xff]
      %v370 = vld [vmem:[#allocation2 + $0x78] sm:$0xff]
      %v371 = vld [vmem:[#allocation2 + $0x80] sm:$0xff]
      %v372 = vld [vmem:[#allocation2 + $0x88] sm:$0xff]
      %v373 = vld [vmem:[#allocation2 + $0x90] sm:$0xff]
      %v374 = vld [vmem:[#allocation2 + $0x98] sm:$0xff]
      %v375 = vld [vmem:[#allocation2 + $0xa0] sm:$0xff]
      %v376 = vld [vmem:[#allocation2 + $0xa8] sm:$0xff]
      %v377 = vld [vmem:[#allocation2 + $0xb0] sm:$0xff]
      %v378 = vld [vmem:[#allocation2 + $0xb8] sm:$0xff]
      %v379 = vld [vmem:[#allocation2 + $0xc0] sm:$0xff]
      %v380 = vld [vmem:[#allocation2 + $0xc8] sm:$0xff]
      %v381 = vld [vmem:[#allocation2 + $0xd0] sm:$0xff]
      %v382 = vld [vmem:[#allocation2 + $0xd8] sm:$0xff]
      %v383 = vld [vmem:[#allocation2 + $0xe0] sm:$0xff]
      %v384 = vld [vmem:[#allocation2 + $0xe8] sm:$0xff]
      %v385 = vld [vmem:[#allocation2 + $0xf0] sm:$0xff]
      %v386 = vld [vmem:[#allocation2 + $0xf8] sm:$0xff]
      %v387 = vld [vmem:[%s287] sm:$0xf]
      %v388 = vld [vmem:[%s287 + $0x4] sm:$0xf]
      %v389 = vld [vmem:[%s287 + $0x8] sm:$0xf]
      %v390 = vld [vmem:[%s287 + $0xc] sm:$0xf]
      %v391 = vld [vmem:[%s287 + $0x10] sm:$0xf]
      %v392 = vld [vmem:[%s287 + $0x14] sm:$0xf]
      %v393 = vld [vmem:[%s287 + $0x18] sm:$0xf]
      %v394 = vld [vmem:[%s287 + $0x1c] sm:$0xf]
      %v395 = vld [vmem:[%s287 + $0x20] sm:$0xf]
      %v396 = vld [vmem:[%s287 + $0x24] sm:$0xf]
      %v397 = vld [vmem:[%s287 + $0x28] sm:$0xf]
      %v398 = vld [vmem:[%s287 + $0x2c] sm:$0xf]
      %v399 = vld [vmem:[%s287 + $0x30] sm:$0xf]
      %v400 = vld [vmem:[%s287 + $0x34] sm:$0xf]
      %v401 = vld [vmem:[%s287 + $0x38] sm:$0xf]
      %v402 = vld [vmem:[%s287 + $0x3c] sm:$0xf]
      %v403 = vld [vmem:[%s287 + $0x40] sm:$0xf]
      %v404 = vld [vmem:[%s287 + $0x44] sm:$0xf]
      %v405 = vld [vmem:[%s287 + $0x48] sm:$0xf]
      %v406 = vld [vmem:[%s287 + $0x4c] sm:$0xf]
      %v407 = vld [vmem:[%s287 + $0x50] sm:$0xf]
      %v408 = vld [vmem:[%s287 + $0x54] sm:$0xf]
      %v409 = vld [vmem:[%s287 + $0x58] sm:$0xf]
      %v410 = vld [vmem:[%s287 + $0x5c] sm:$0xf]
      %v411 = vld [vmem:[%s287 + $0x60] sm:$0xf]
      %v412 = vld [vmem:[%s287 + $0x64] sm:$0xf]
      %v413 = vld [vmem:[%s287 + $0x68] sm:$0xf]
      %v414 = vld [vmem:[%s287 + $0x6c] sm:$0xf]
      %v415 = vld [vmem:[%s287 + $0x70] sm:$0xf]
      %v416 = vld [vmem:[%s287 + $0x74] sm:$0xf]
      %v417 = vld [vmem:[%s287 + $0x78] sm:$0xf]
      %v418 = vld [vmem:[%s287 + $0x7c] sm:$0xf]
      %v419 = vld [vmem:[%s296] sm:$0xf]
      %v420 = vld [vmem:[%s296 + $0x4] sm:$0xf]
      %v421 = vld [vmem:[%s296 + $0x8] sm:$0xf]
      %v422 = vld [vmem:[%s296 + $0xc] sm:$0xf]
      %v423 = vld [vmem:[%s296 + $0x10] sm:$0xf]
      %v424 = vld [vmem:[%s296 + $0x14] sm:$0xf]
      %v425 = vld [vmem:[%s296 + $0x18] sm:$0xf]
      %v426 = vld [vmem:[%s296 + $0x1c] sm:$0xf]
      %v427 = vld [vmem:[%s296 + $0x20] sm:$0xf]
      %v428 = vld [vmem:[%s296 + $0x24] sm:$0xf]
      %v429 = vld [vmem:[%s296 + $0x28] sm:$0xf]
      %v430 = vld [vmem:[%s296 + $0x2c] sm:$0xf]
      %v431 = vld [vmem:[%s296 + $0x30] sm:$0xf]
      %v432 = vld [vmem:[%s296 + $0x34] sm:$0xf]
      %v433 = vld [vmem:[%s296 + $0x38] sm:$0xf]
      %v434 = vld [vmem:[%s296 + $0x3c] sm:$0xf]
      %v467 = vunpack.c.l.b16 %v387
      %v468 = vunpack.c.l.b16 %v388
      %v469 = vunpack.c.l.b16 %v389
      %v470 = vunpack.c.l.b16 %v390
      %v471 = vunpack.c.l.b16 %v391
      %v472 = vunpack.c.l.b16 %v392
      %v473 = vunpack.c.l.b16 %v393
      %v474 = vunpack.c.l.b16 %v394
      %v475 = vunpack.c.l.b16 %v395
      %v476 = vunpack.c.l.b16 %v396
      %v477 = vunpack.c.l.b16 %v397
      %v478 = vunpack.c.l.b16 %v398
      %v479 = vunpack.c.l.b16 %v399
      %v480 = vunpack.c.l.b16 %v400
      %v481 = vunpack.c.l.b16 %v401
      %v482 = vunpack.c.l.b16 %v402
      %v483 = vunpack.c.l.b16 %v403
      %v484 = vunpack.c.l.b16 %v404
      %v485 = vunpack.c.l.b16 %v405
      %v486 = vunpack.c.l.b16 %v406
      %v487 = vunpack.c.l.b16 %v407
      %v488 = vunpack.c.l.b16 %v408
      %v489 = vunpack.c.l.b16 %v409
      %v490 = vunpack.c.l.b16 %v410
      %v491 = vunpack.c.l.b16 %v411
      %v492 = vunpack.c.l.b16 %v412
      %v493 = vunpack.c.l.b16 %v413
      %v494 = vunpack.c.l.b16 %v414
      %v495 = vunpack.c.l.b16 %v415
      %v496 = vunpack.c.l.b16 %v416
      %v497 = vunpack.c.l.b16 %v417
      %v498 = vunpack.c.l.b16 %v418
      %v499 = vpack.c.b16 %v468, %v467
      %v500 = vpack.c.b16 %v470, %v469
      %v501 = vpack.c.b16 %v472, %v471
      %v502 = vpack.c.b16 %v474, %v473
      %v503 = vpack.c.b16 %v476, %v475
      %v504 = vpack.c.b16 %v478, %v477
      %v505 = vpack.c.b16 %v480, %v479
      %v506 = vpack.c.b16 %v482, %v481
      %v507 = vpack.c.b16 %v484, %v483
      %v508 = vpack.c.b16 %v486, %v485
      %v509 = vpack.c.b16 %v488, %v487
      %v510 = vpack.c.b16 %v490, %v489
      %v511 = vpack.c.b16 %v492, %v491
      %v512 = vpack.c.b16 %v494, %v493
      %v513 = vpack.c.b16 %v496, %v495
      %v514 = vpack.c.b16 %v498, %v497
      %v547 = vunpack.c.l.b16 %v419
      %v548 = vunpack.c.l.b16 %v420
      %v549 = vunpack.c.l.b16 %v421
      %v550 = vunpack.c.l.b16 %v422
      %v551 = vunpack.c.l.b16 %v423
      %v552 = vunpack.c.l.b16 %v424
      %v553 = vunpack.c.l.b16 %v425
      %v554 = vunpack.c.l.b16 %v426
      %v555 = vunpack.c.l.b16 %v427
      %v556 = vunpack.c.l.b16 %v428
      %v557 = vunpack.c.l.b16 %v429
      %v558 = vunpack.c.l.b16 %v430
      %v559 = vunpack.c.l.b16 %v431
      %v560 = vunpack.c.l.b16 %v432
      %v561 = vunpack.c.l.b16 %v433
      %v562 = vunpack.c.l.b16 %v434
      %v563 = vpack.c.b16 %v548, %v547
      %v564 = vpack.c.b16 %v550, %v549
      %v565 = vpack.c.b16 %v552, %v551
      %v566 = vpack.c.b16 %v554, %v553
      %v567 = vpack.c.b16 %v556, %v555
      %v568 = vpack.c.b16 %v558, %v557
      %v569 = vpack.c.b16 %v560, %v559
      %v570 = vpack.c.b16 %v562, %v561
      %579 = vmatpush.bf16.msra.mxu0 %v570
      %580 = vmatpush.bf16.msra.mxu0 %v569
      %581 = vmatpush.bf16.msra.mxu0 %v568
      %582 = vmatpush.bf16.msra.mxu0 %v567
      %583 = vmatpush.bf16.msra.mxu0 %v566
      %584 = vmatpush.bf16.msra.mxu0 %v565
      %585 = vmatpush.bf16.msra.mxu0 %v564
      %586 = vmatpush.bf16.msra.mxu0 %v563
      %587 = vmatmul.bf16.gmra.mxu0 %v499
      %v588 = vpop.f32.mrf.mxu0
      %v589 = vadd.f32 0.0, %v588
      %v590 = vpop.f32.mrf.mxu0
      %v591 = vadd.f32 0.0, %v590
      %592 = vmatmul.bf16.gmra.mxu0 %v500
      %v593 = vpop.f32.mrf.mxu0
      %v594 = vadd.f32 0.0, %v593
      %v595 = vpop.f32.mrf.mxu0
      %v596 = vadd.f32 0.0, %v595
      %597 = vmatmul.bf16.gmra.mxu0 %v501
      %v598 = vpop.f32.mrf.mxu0
      %v599 = vadd.f32 0.0, %v598
      %v600 = vpop.f32.mrf.mxu0
      %v601 = vadd.f32 0.0, %v600
      %602 = vmatmul.bf16.gmra.mxu0 %v502
      %v603 = vpop.f32.mrf.mxu0
      %v604 = vadd.f32 0.0, %v603
      %v605 = vpop.f32.mrf.mxu0
      %v606 = vadd.f32 0.0, %v605
      %607 = vmatmul.bf16.gmra.mxu0 %v503
      %v608 = vpop.f32.mrf.mxu0
      %v609 = vadd.f32 0.0, %v608
      %v610 = vpop.f32.mrf.mxu0
      %v611 = vadd.f32 0.0, %v610
      %612 = vmatmul.bf16.gmra.mxu0 %v504
      %v613 = vpop.f32.mrf.mxu0
      %v614 = vadd.f32 0.0, %v613
      %v615 = vpop.f32.mrf.mxu0
      %v616 = vadd.f32 0.0, %v615
      %617 = vmatmul.bf16.gmra.mxu0 %v505
      %v618 = vpop.f32.mrf.mxu0
      %v619 = vadd.f32 0.0, %v618
      %v620 = vpop.f32.mrf.mxu0
      %v621 = vadd.f32 0.0, %v620
      %622 = vmatmul.bf16.gmra.mxu0 %v506
      %v623 = vpop.f32.mrf.mxu0
      %v624 = vadd.f32 0.0, %v623
      %v625 = vpop.f32.mrf.mxu0
      %v626 = vadd.f32 0.0, %v625
      %627 = vmatmul.bf16.gmra.mxu0 %v507
      %v628 = vpop.f32.mrf.mxu0
      %v629 = vadd.f32 0.0, %v628
      %v630 = vpop.f32.mrf.mxu0
      %v631 = vadd.f32 0.0, %v630
      %632 = vmatmul.bf16.gmra.mxu0 %v508
      %v633 = vpop.f32.mrf.mxu0
      %v634 = vadd.f32 0.0, %v633
      %v635 = vpop.f32.mrf.mxu0
      %v636 = vadd.f32 0.0, %v635
      %637 = vmatmul.bf16.gmra.mxu0 %v509
      %v638 = vpop.f32.mrf.mxu0
      %v639 = vadd.f32 0.0, %v638
      %v640 = vpop.f32.mrf.mxu0
      %v641 = vadd.f32 0.0, %v640
      %642 = vmatmul.bf16.gmra.mxu0 %v510
      %v643 = vpop.f32.mrf.mxu0
      %v644 = vadd.f32 0.0, %v643
      %v645 = vpop.f32.mrf.mxu0
      %v646 = vadd.f32 0.0, %v645
      %647 = vmatmul.bf16.gmra.mxu0 %v511
      %v648 = vpop.f32.mrf.mxu0
      %v649 = vadd.f32 0.0, %v648
      %v650 = vpop.f32.mrf.mxu0
      %v651 = vadd.f32 0.0, %v650
      %652 = vmatmul.bf16.gmra.mxu0 %v512
      %v653 = vpop.f32.mrf.mxu0
      %v654 = vadd.f32 0.0, %v653
      %v655 = vpop.f32.mrf.mxu0
      %v656 = vadd.f32 0.0, %v655
      %657 = vmatmul.bf16.gmra.mxu0 %v513
      %v658 = vpop.f32.mrf.mxu0
      %v659 = vadd.f32 0.0, %v658
      %v660 = vpop.f32.mrf.mxu0
      %v661 = vadd.f32 0.0, %v660
      %662 = vmatmul.bf16.gmra.mxu0 %v514
      %v663 = vpop.f32.mrf.mxu0
      %v664 = vadd.f32 0.0, %v663
      %v665 = vpop.f32.mrf.mxu0
      %v666 = vadd.f32 0.0, %v665
      %667 = vdwg.mxu0
      %v668 = vadd.f32 %v355, %v589
      %v669 = vadd.f32 %v356, %v591
      %v670 = vadd.f32 %v357, %v594
      %v671 = vadd.f32 %v358, %v596
      %v672 = vadd.f32 %v359, %v599
      %v673 = vadd.f32 %v360, %v601
      %v674 = vadd.f32 %v361, %v604
      %v675 = vadd.f32 %v362, %v606
      %v676 = vadd.f32 %v363, %v609
      %v677 = vadd.f32 %v364, %v611
      %v678 = vadd.f32 %v365, %v614
      %v679 = vadd.f32 %v366, %v616
      %v680 = vadd.f32 %v367, %v619
      %v681 = vadd.f32 %v368, %v621
      %v682 = vadd.f32 %v369, %v624
      %v683 = vadd.f32 %v370, %v626
      %v684 = vadd.f32 %v371, %v629
      %v685 = vadd.f32 %v372, %v631
      %v686 = vadd.f32 %v373, %v634
      %v687 = vadd.f32 %v374, %v636
      %v688 = vadd.f32 %v375, %v639
      %v689 = vadd.f32 %v376, %v641
      %v690 = vadd.f32 %v377, %v644
      %v691 = vadd.f32 %v378, %v646
      %v692 = vadd.f32 %v379, %v649
      %v693 = vadd.f32 %v380, %v651
      %v694 = vadd.f32 %v381, %v654
      %v695 = vadd.f32 %v382, %v656
      %v696 = vadd.f32 %v383, %v659
      %v697 = vadd.f32 %v384, %v661
      %v698 = vadd.f32 %v385, %v664
      %v699 = vadd.f32 %v386, %v666
      %700 = vst [vmem:[#allocation2] sm:$0xff] %v668
      %701 = vst [vmem:[#allocation2 + $0x8] sm:$0xff] %v669
      %702 = vst [vmem:[#allocation2 + $0x10] sm:$0xff] %v670
      %703 = vst [vmem:[#allocation2 + $0x18] sm:$0xff] %v671
      %704 = vst [vmem:[#allocation2 + $0x20] sm:$0xff] %v672
      %705 = vst [vmem:[#allocation2 + $0x28] sm:$0xff] %v673
      %706 = vst [vmem:[#allocation2 + $0x30] sm:$0xff] %v674
      %707 = vst [vmem:[#allocation2 + $0x38] sm:$0xff] %v675
      %708 = vst [vmem:[#allocation2 + $0x40] sm:$0xff] %v676
      %709 = vst [vmem:[#allocation2 + $0x48] sm:$0xff] %v677
      %710 = vst [vmem:[#allocation2 + $0x50] sm:$0xff] %v678
      %711 = vst [vmem:[#allocation2 + $0x58] sm:$0xff] %v679
      %712 = vst [vmem:[#allocation2 + $0x60] sm:$0xff] %v680
      %713 = vst [vmem:[#allocation2 + $0x68] sm:$0xff] %v681
      %714 = vst [vmem:[#allocation2 + $0x70] sm:$0xff] %v682
      %715 = vst [vmem:[#allocation2 + $0x78] sm:$0xff] %v683
      %716 = vst [vmem:[#allocation2 + $0x80] sm:$0xff] %v684
      %717 = vst [vmem:[#allocation2 + $0x88] sm:$0xff] %v685
      %718 = vst [vmem:[#allocation2 + $0x90] sm:$0xff] %v686
      %719 = vst [vmem:[#allocation2 + $0x98] sm:$0xff] %v687
      %720 = vst [vmem:[#allocation2 + $0xa0] sm:$0xff] %v688
      %721 = vst [vmem:[#allocation2 + $0xa8] sm:$0xff] %v689
      %722 = vst [vmem:[#allocation2 + $0xb0] sm:$0xff] %v690
      %723 = vst [vmem:[#allocation2 + $0xb8] sm:$0xff] %v691
      %724 = vst [vmem:[#allocation2 + $0xc0] sm:$0xff] %v692
      %725 = vst [vmem:[#allocation2 + $0xc8] sm:$0xff] %v693
      %726 = vst [vmem:[#allocation2 + $0xd0] sm:$0xff] %v694
      %727 = vst [vmem:[#allocation2 + $0xd8] sm:$0xff] %v695
      %728 = vst [vmem:[#allocation2 + $0xe0] sm:$0xff] %v696
      %729 = vst [vmem:[#allocation2 + $0xe8] sm:$0xff] %v697
      %730 = vst [vmem:[#allocation2 + $0xf0] sm:$0xff] %v698
      %731 = vst [vmem:[#allocation2 + $0xf8] sm:$0xff] %v699
      // Predicated region
      $region41: #{_lambda_.4} parent=35 // pred_check
        %p732 = pneg %p319
      $region42: #{_lambda_.4} parent=35 // pred_check_branch
        %734 = sbr.rel (%p732) target = $region44
      $region43: #{_lambda_.4} parent=35 // pred_region
        %v735 = vld [vmem:[#allocation2] sm:$0xff]
        %v736 = vld [vmem:[#allocation2 + $0x8] sm:$0xff]
        %v737 = vld [vmem:[#allocation2 + $0x10] sm:$0xff]
        %v738 = vld [vmem:[#allocation2 + $0x18] sm:$0xff]
        %v739 = vld [vmem:[#allocation2 + $0x20] sm:$0xff]
        %v740 = vld [vmem:[#allocation2 + $0x28] sm:$0xff]
        %v741 = vld [vmem:[#allocation2 + $0x30] sm:$0xff]
        %v742 = vld [vmem:[#allocation2 + $0x38] sm:$0xff]
        %v743 = vld [vmem:[#allocation2 + $0x40] sm:$0xff]
        %v744 = vld [vmem:[#allocation2 + $0x48] sm:$0xff]
        %v745 = vld [vmem:[#allocation2 + $0x50] sm:$0xff]
        %v746 = vld [vmem:[#allocation2 + $0x58] sm:$0xff]
        %v747 = vld [vmem:[#allocation2 + $0x60] sm:$0xff]
        %v748 = vld [vmem:[#allocation2 + $0x68] sm:$0xff]
        %v749 = vld [vmem:[#allocation2 + $0x70] sm:$0xff]
        %v750 = vld [vmem:[#allocation2 + $0x78] sm:$0xff]
        %v751 = vld [vmem:[#allocation2 + $0x80] sm:$0xff]
        %v752 = vld [vmem:[#allocation2 + $0x88] sm:$0xff]
        %v753 = vld [vmem:[#allocation2 + $0x90] sm:$0xff]
        %v754 = vld [vmem:[#allocation2 + $0x98] sm:$0xff]
        %v755 = vld [vmem:[#allocation2 + $0xa0] sm:$0xff]
        %v756 = vld [vmem:[#allocation2 + $0xa8] sm:$0xff]
        %v757 = vld [vmem:[#allocation2 + $0xb0] sm:$0xff]
        %v758 = vld [vmem:[#allocation2 + $0xb8] sm:$0xff]
        %v759 = vld [vmem:[#allocation2 + $0xc0] sm:$0xff]
        %v760 = vld [vmem:[#allocation2 + $0xc8] sm:$0xff]
        %v761 = vld [vmem:[#allocation2 + $0xd0] sm:$0xff]
        %v762 = vld [vmem:[#allocation2 + $0xd8] sm:$0xff]
        %v763 = vld [vmem:[#allocation2 + $0xe0] sm:$0xff]
        %v764 = vld [vmem:[#allocation2 + $0xe8] sm:$0xff]
        %v765 = vld [vmem:[#allocation2 + $0xf0] sm:$0xff]
        %v766 = vld [vmem:[#allocation2 + $0xf8] sm:$0xff]
        %v767 = vld [vmem:[%s300] sm:$0x1]
        %v769 = vperm.slane %v767, 0
        %v771 = vadd.f32 %v735, %v769
        %v772 = vadd.f32 %v736, %v769
        %v773 = vadd.f32 %v737, %v769
        %v774 = vadd.f32 %v738, %v769
        %v775 = vadd.f32 %v739, %v769
        %v776 = vadd.f32 %v740, %v769
        %v777 = vadd.f32 %v741, %v769
        %v778 = vadd.f32 %v742, %v769
        %v779 = vadd.f32 %v743, %v769
        %v780 = vadd.f32 %v744, %v769
        %v781 = vadd.f32 %v745, %v769
        %v782 = vadd.f32 %v746, %v769
        %v783 = vadd.f32 %v747, %v769
        %v784 = vadd.f32 %v748, %v769
        %v785 = vadd.f32 %v749, %v769
        %v786 = vadd.f32 %v750, %v769
        %v787 = vadd.f32 %v751, %v769
        %v788 = vadd.f32 %v752, %v769
        %v789 = vadd.f32 %v753, %v769
        %v790 = vadd.f32 %v754, %v769
        %v791 = vadd.f32 %v755, %v769
        %v792 = vadd.f32 %v756, %v769
        %v793 = vadd.f32 %v757, %v769
        %v794 = vadd.f32 %v758, %v769
        %v795 = vadd.f32 %v759, %v769
        %v796 = vadd.f32 %v760, %v769
        %v797 = vadd.f32 %v761, %v769
        %v798 = vadd.f32 %v762, %v769
        %v799 = vadd.f32 %v763, %v769
        %v800 = vadd.f32 %v764, %v769
        %v801 = vadd.f32 %v765, %v769
        %v802 = vadd.f32 %v766, %v769
        %v803 = vmax.f32 %v771, 0.0
        %v804 = vmax.f32 %v772, 0.0
        %v805 = vmax.f32 %v773, 0.0
        %v806 = vmax.f32 %v774, 0.0
        %v807 = vmax.f32 %v775, 0.0
        %v808 = vmax.f32 %v776, 0.0
        %v809 = vmax.f32 %v777, 0.0
        %v810 = vmax.f32 %v778, 0.0
        %v811 = vmax.f32 %v779, 0.0
        %v812 = vmax.f32 %v780, 0.0
        %v813 = vmax.f32 %v781, 0.0
        %v814 = vmax.f32 %v782, 0.0
        %v815 = vmax.f32 %v783, 0.0
        %v816 = vmax.f32 %v784, 0.0
        %v817 = vmax.f32 %v785, 0.0
        %v818 = vmax.f32 %v786, 0.0
        %v819 = vmax.f32 %v787, 0.0
        %v820 = vmax.f32 %v788, 0.0
        %v821 = vmax.f32 %v789, 0.0
        %v822 = vmax.f32 %v790, 0.0
        %v823 = vmax.f32 %v791, 0.0
        %v824 = vmax.f32 %v792, 0.0
        %v825 = vmax.f32 %v793, 0.0
        %v826 = vmax.f32 %v794, 0.0
        %v827 = vmax.f32 %v795, 0.0
        %v828 = vmax.f32 %v796, 0.0
        %v829 = vmax.f32 %v797, 0.0
        %v830 = vmax.f32 %v798, 0.0
        %v831 = vmax.f32 %v799, 0.0
        %v832 = vmax.f32 %v800, 0.0
        %v833 = vmax.f32 %v801, 0.0
        %v834 = vmax.f32 %v802, 0.0
        %v835 = vld [vmem:[%s308] sm:$0xf]
        %v836 = vld [vmem:[%s308 + $0x4] sm:$0xf]
        %v837 = vld [vmem:[%s308 + $0x8] sm:$0xf]
        %v838 = vld [vmem:[%s308 + $0xc] sm:$0xf]
        %v839 = vld [vmem:[%s308 + $0x10] sm:$0xf]
        %v840 = vld [vmem:[%s308 + $0x14] sm:$0xf]
        %v841 = vld [vmem:[%s308 + $0x18] sm:$0xf]
        %v842 = vld [vmem:[%s308 + $0x1c] sm:$0xf]
        %v843 = vld [vmem:[%s308 + $0x20] sm:$0xf]
        %v844 = vld [vmem:[%s308 + $0x24] sm:$0xf]
        %v845 = vld [vmem:[%s308 + $0x28] sm:$0xf]
        %v846 = vld [vmem:[%s308 + $0x2c] sm:$0xf]
        %v847 = vld [vmem:[%s308 + $0x30] sm:$0xf]
        %v848 = vld [vmem:[%s308 + $0x34] sm:$0xf]
        %v849 = vld [vmem:[%s308 + $0x38] sm:$0xf]
        %v850 = vld [vmem:[%s308 + $0x3c] sm:$0xf]
        %v851 = vld [vmem:[%s308 + $0x40] sm:$0xf]
        %v852 = vld [vmem:[%s308 + $0x44] sm:$0xf]
        %v853 = vld [vmem:[%s308 + $0x48] sm:$0xf]
        %v854 = vld [vmem:[%s308 + $0x4c] sm:$0xf]
        %v855 = vld [vmem:[%s308 + $0x50] sm:$0xf]
        %v856 = vld [vmem:[%s308 + $0x54] sm:$0xf]
        %v857 = vld [vmem:[%s308 + $0x58] sm:$0xf]
        %v858 = vld [vmem:[%s308 + $0x5c] sm:$0xf]
        %v859 = vld [vmem:[%s308 + $0x60] sm:$0xf]
        %v860 = vld [vmem:[%s308 + $0x64] sm:$0xf]
        %v861 = vld [vmem:[%s308 + $0x68] sm:$0xf]
        %v862 = vld [vmem:[%s308 + $0x6c] sm:$0xf]
        %v863 = vld [vmem:[%s308 + $0x70] sm:$0xf]
        %v864 = vld [vmem:[%s308 + $0x74] sm:$0xf]
        %v865 = vld [vmem:[%s308 + $0x78] sm:$0xf]
        %v866 = vld [vmem:[%s308 + $0x7c] sm:$0xf]
        %v867 = vunpack.c.l.bf16 %v835
        %v868 = vunpack.c.l.bf16 %v836
        %v869 = vunpack.c.l.bf16 %v837
        %v870 = vunpack.c.l.bf16 %v838
        %v871 = vunpack.c.l.bf16 %v839
        %v872 = vunpack.c.l.bf16 %v840
        %v873 = vunpack.c.l.bf16 %v841
        %v874 = vunpack.c.l.bf16 %v842
        %v875 = vunpack.c.l.bf16 %v843
        %v876 = vunpack.c.l.bf16 %v844
        %v877 = vunpack.c.l.bf16 %v845
        %v878 = vunpack.c.l.bf16 %v846
        %v879 = vunpack.c.l.bf16 %v847
        %v880 = vunpack.c.l.bf16 %v848
        %v881 = vunpack.c.l.bf16 %v849
        %v882 = vunpack.c.l.bf16 %v850
        %v883 = vunpack.c.l.bf16 %v851
        %v884 = vunpack.c.l.bf16 %v852
        %v885 = vunpack.c.l.bf16 %v853
        %v886 = vunpack.c.l.bf16 %v854
        %v887 = vunpack.c.l.bf16 %v855
        %v888 = vunpack.c.l.bf16 %v856
        %v889 = vunpack.c.l.bf16 %v857
        %v890 = vunpack.c.l.bf16 %v858
        %v891 = vunpack.c.l.bf16 %v859
        %v892 = vunpack.c.l.bf16 %v860
        %v893 = vunpack.c.l.bf16 %v861
        %v894 = vunpack.c.l.bf16 %v862
        %v895 = vunpack.c.l.bf16 %v863
        %v896 = vunpack.c.l.bf16 %v864
        %v897 = vunpack.c.l.bf16 %v865
        %v898 = vunpack.c.l.bf16 %v866
        %v899 = vadd.f32 %v803, %v867
        %v900 = vadd.f32 %v804, %v868
        %v901 = vadd.f32 %v805, %v869
        %v902 = vadd.f32 %v806, %v870
        %v903 = vadd.f32 %v807, %v871
        %v904 = vadd.f32 %v808, %v872
        %v905 = vadd.f32 %v809, %v873
        %v906 = vadd.f32 %v810, %v874
        %v907 = vadd.f32 %v811, %v875
        %v908 = vadd.f32 %v812, %v876
        %v909 = vadd.f32 %v813, %v877
        %v910 = vadd.f32 %v814, %v878
        %v911 = vadd.f32 %v815, %v879
        %v912 = vadd.f32 %v816, %v880
        %v913 = vadd.f32 %v817, %v881
        %v914 = vadd.f32 %v818, %v882
        %v915 = vadd.f32 %v819, %v883
        %v916 = vadd.f32 %v820, %v884
        %v917 = vadd.f32 %v821, %v885
        %v918 = vadd.f32 %v822, %v886
        %v919 = vadd.f32 %v823, %v887
        %v920 = vadd.f32 %v824, %v888
        %v921 = vadd.f32 %v825, %v889
        %v922 = vadd.f32 %v826, %v890
        %v923 = vadd.f32 %v827, %v891
        %v924 = vadd.f32 %v828, %v892
        %v925 = vadd.f32 %v829, %v893
        %v926 = vadd.f32 %v830, %v894
        %v927 = vadd.f32 %v831, %v895
        %v928 = vadd.f32 %v832, %v896
        %v929 = vadd.f32 %v833, %v897
        %v930 = vadd.f32 %v834, %v898
        %v931 = vpack.c.bf16 %v899, %v899
        %v932 = vpack.c.bf16 %v900, %v900
        %v933 = vpack.c.bf16 %v901, %v901
        %v934 = vpack.c.bf16 %v902, %v902
        %v935 = vpack.c.bf16 %v903, %v903
        %v936 = vpack.c.bf16 %v904, %v904
        %v937 = vpack.c.bf16 %v905, %v905
        %v938 = vpack.c.bf16 %v906, %v906
        %v939 = vpack.c.bf16 %v907, %v907
        %v940 = vpack.c.bf16 %v908, %v908
        %v941 = vpack.c.bf16 %v909, %v909
        %v942 = vpack.c.bf16 %v910, %v910
        %v943 = vpack.c.bf16 %v911, %v911
        %v944 = vpack.c.bf16 %v912, %v912
        %v945 = vpack.c.bf16 %v913, %v913
        %v946 = vpack.c.bf16 %v914, %v914
        %v947 = vpack.c.bf16 %v915, %v915
        %v948 = vpack.c.bf16 %v916, %v916
        %v949 = vpack.c.bf16 %v917, %v917
        %v950 = vpack.c.bf16 %v918, %v918
        %v951 = vpack.c.bf16 %v919, %v919
        %v952 = vpack.c.bf16 %v920, %v920
        %v953 = vpack.c.bf16 %v921, %v921
        %v954 = vpack.c.bf16 %v922, %v922
        %v955 = vpack.c.bf16 %v923, %v923
        %v956 = vpack.c.bf16 %v924, %v924
        %v957 = vpack.c.bf16 %v925, %v925
        %v958 = vpack.c.bf16 %v926, %v926
        %v959 = vpack.c.bf16 %v927, %v927
        %v960 = vpack.c.bf16 %v928, %v928
        %v961 = vpack.c.bf16 %v929, %v929
        %v962 = vpack.c.bf16 %v930, %v930
        %963 = vst [vmem:[%s317] sm:$0xf] %v931
        %964 = vst [vmem:[%s317 + $0x4] sm:$0xf] %v932
        %965 = vst [vmem:[%s317 + $0x8] sm:$0xf] %v933
        %966 = vst [vmem:[%s317 + $0xc] sm:$0xf] %v934
        %967 = vst [vmem:[%s317 + $0x10] sm:$0xf] %v935
        %968 = vst [vmem:[%s317 + $0x14] sm:$0xf] %v936
        %969 = vst [vmem:[%s317 + $0x18] sm:$0xf] %v937
        %970 = vst [vmem:[%s317 + $0x1c] sm:$0xf] %v938
        %971 = vst [vmem:[%s317 + $0x20] sm:$0xf] %v939
        %972 = vst [vmem:[%s317 + $0x24] sm:$0xf] %v940
        %973 = vst [vmem:[%s317 + $0x28] sm:$0xf] %v941
        %974 = vst [vmem:[%s317 + $0x2c] sm:$0xf] %v942
        %975 = vst [vmem:[%s317 + $0x30] sm:$0xf] %v943
        %976 = vst [vmem:[%s317 + $0x34] sm:$0xf] %v944
        %977 = vst [vmem:[%s317 + $0x38] sm:$0xf] %v945
        %978 = vst [vmem:[%s317 + $0x3c] sm:$0xf] %v946
        %979 = vst [vmem:[%s317 + $0x40] sm:$0xf] %v947
        %980 = vst [vmem:[%s317 + $0x44] sm:$0xf] %v948
        %981 = vst [vmem:[%s317 + $0x48] sm:$0xf] %v949
        %982 = vst [vmem:[%s317 + $0x4c] sm:$0xf] %v950
        %983 = vst [vmem:[%s317 + $0x50] sm:$0xf] %v951
        %984 = vst [vmem:[%s317 + $0x54] sm:$0xf] %v952
        %985 = vst [vmem:[%s317 + $0x58] sm:$0xf] %v953
        %986 = vst [vmem:[%s317 + $0x5c] sm:$0xf] %v954
        %987 = vst [vmem:[%s317 + $0x60] sm:$0xf] %v955
        %988 = vst [vmem:[%s317 + $0x64] sm:$0xf] %v956
        %989 = vst [vmem:[%s317 + $0x68] sm:$0xf] %v957
        %990 = vst [vmem:[%s317 + $0x6c] sm:$0xf] %v958
        %991 = vst [vmem:[%s317 + $0x70] sm:$0xf] %v959
        %992 = vst [vmem:[%s317 + $0x74] sm:$0xf] %v960
        %993 = vst [vmem:[%s317 + $0x78] sm:$0xf] %v961
        %994 = vst [vmem:[%s317 + $0x7c] sm:$0xf] %v962
      $region44: #{_lambda_.4} parent=35 // pred_fallthru
        _
      %s995 = smul.u32 32, %s20
      %p996 = scmp.lt.s32.totalorder %s995, 63
      %s997 = scalar_select %p996, %s995, 63
      %p998 = scmp.lt.s32.totalorder %s21, 0
      %s999 = scalar_select %p998, %s21, 0
      %s1000 = sadd.s32 %s999, %s997
      %s1001 = smul.addr %s1000, 4
      %s1002 = scalar_lea.vmem %s4, %s1001
      // Predicated region
      $region45: #{_lambda_.4} parent=35 // pred_check
        %p1003 = pneg %p164
      $region46: #{_lambda_.4} parent=35 // pred_check_branch
        %1005 = sbr.rel (%p1003) target = $region48
      $region47: #{_lambda_.4} parent=35 // pred_region
        %s1006 = smul.u32 32, %s20
      $region48: #{_lambda_.4} parent=35 // pred_fallthru
        _
    $region36: #{_lambda_.4} parent=5 // pred_fallthru
      _
    %p1007 = scmp.le.s32.totalorder 2, %s10
    // Predicated region
    $region49: #{_lambda_.4} parent=5 // pred_check
      %p1008 = pneg %p1007
    $region50: #{_lambda_.4} parent=5 // pred_check_branch
      %1010 = sbr.rel (%p1008) target = $region52
    $region51: #{_lambda_.4} parent=5 // pred_region
      %s1011 = ssub.s32 %s10, 2
      // Predicated region
      $region53: #{_lambda_.4} parent=51 // pred_check
        %p1012 = pneg %p170
      $region54: #{_lambda_.4} parent=51 // pred_check_branch
        %1014 = sbr.rel (%p1012) target = $region56
      $region55: #{_lambda_.4} parent=51 // pred_region
        %s1015 = smul.u32 32, %s23
        %p1016 = scmp.lt.s32.totalorder %s1015, 63
        %s1017 = scalar_select %p1016, %s1015, 63
        %p1018 = scmp.lt.s32.totalorder %s24, 0
        %s1019 = scalar_select %p1018, %s24, 0
        %s1020 = sadd.s32 %s1019, %s1017
        %s1021 = smul.addr %s1020, 4
        %s1022 = scalar_lea.vmem %s4, %s1021
      $region56: #{_lambda_.4} parent=51 // pred_fallthru
        _
    $region52: #{_lambda_.4} parent=5 // pred_fallthru
      _
  $region6: #{_lambda_.4} parent=0 // loop_footer
    %s14 = sadd.s32 1, %s10
  $region7: #{_lambda_.4} parent=0 // loop_footer_branch
    %9 = sbr.rel target = $region3
  $region8: #{_lambda_.4} parent=0 // loop_exit
    _

</llo_original>
